<compile_context>
chip_gen: v7x
topology: tpu7x:2x2x1
jax: 0.10.0
libtpu: 0.0.40
codegen_flags: <defaults>
</compile_context>

<pallas_src>
import functools

import jax
import jax.numpy as jnp
from jax.experimental import pallas as pl
from jax.experimental.pallas import tpu as pltpu


def cnn_kernel(x_ref, wconv_ref, bconv_ref, wfc_ref, bfc_ref, o_ref,
               carry_ref, maxacc_ref, *, K, TS, L):
    # x_ref:     (TB, TS, E)   bf16 activation tile (seq tile s of batch tile b)
    # wconv_ref: (K, E, H)     bf16 conv weight, one (E, H) matrix per tap
    # bconv_ref: (1, H)        f32 conv bias
    # wfc_ref:   (1, H)        f32 FC weight (row)
    # bfc_ref:   (1, 1)        f32 FC bias
    # o_ref:     (TB, 1)       f32 output (resident across the seq axis)
    # carry_ref: (TB, K-1, E)  bf16 seq halo carried between consecutive seq tiles
    # maxacc_ref:(TB, H)       f32 running max accumulator
    s = pl.program_id(1)
    ns = pl.num_programs(1)

    @pl.when(s == 0)
    def _init():
        carry_ref[...] = jnp.zeros(carry_ref.shape, carry_ref.dtype)
        maxacc_ref[...] = jnp.full(maxacc_ref.shape, -jnp.inf, maxacc_ref.dtype)

    x = x_ref[...]                                    # (TB, TS, E) bf16
    TB, _, E = x.shape
    H = wconv_ref.shape[2]

    # Inputs covered this step: rows [s*TS - (K-1), (s+1)*TS).
    x_ext = jnp.concatenate([carry_ref[...], x], axis=1)       # (TB, TS+K-1, E)

    # K accumulated matmuls on sublane-shifted views (no lane-axis im2col concat):
    # avoids the 3x bf16 temporary and the vld/vst + shuffle traffic it implied.
    conv = jnp.dot(x_ext[:, 0:TS, :].reshape(TB * TS, E), wconv_ref[0],
                   preferred_element_type=jnp.float32)
    for k in range(1, K):
        conv = conv + jnp.dot(x_ext[:, k:k + TS, :].reshape(TB * TS, E),
                              wconv_ref[k], preferred_element_type=jnp.float32)
    conv = conv.reshape(TB, TS, H)

    # Carry the last K-1 input rows for the next seq tile.
    carry_ref[...] = x[:, TS - (K - 1):, :]

    # Only the first / last seq tiles can contain out-of-range conv rows.
    need_mask = jnp.logical_or(s == 0, s == ns - 1)

    @pl.when(need_mask)
    def _masked_update():
        base = s * TS - (K - 1)
        l_idx = base + jax.lax.broadcasted_iota(jnp.int32, (1, TS, 1), 1)
        valid = (l_idx >= 0) & (l_idx < L)
        masked = jnp.where(valid, conv, -jnp.inf)
        maxacc_ref[...] = jnp.maximum(maxacc_ref[...], jnp.max(masked, axis=1))

    @pl.when(jnp.logical_not(need_mask))
    def _fast_update():
        maxacc_ref[...] = jnp.maximum(maxacc_ref[...], jnp.max(conv, axis=1))

    @pl.when(s == ns - 1)
    def _finalize():
        pooled = maxacc_ref[...] + bconv_ref[...]     # conv bias hoisted past the max
        out = jnp.sum(pooled * wfc_ref[...], axis=-1, keepdims=True) + bfc_ref[...]
        o_ref[...] = out.astype(o_ref.dtype)


def _vmem_cap_bytes():
    try:
        return int(pltpu.get_tpu_info().vmem_capacity_bytes)
    except Exception:
        return 64 << 20       # v7x-safe fallback (smallest VMEM of the three gens)


def cnn_forward(text, text_lengths, params, *, tb=64, ts=256):
    """text: (S, B) int32 token ids (torchtext convention). Returns (B, 1) f32."""
    del text_lengths                     # unused by the PyTorch forward as well
    assert ts % 16 == 0, "ts must be a multiple of 16 (bf16 sublane packing)"
    K = 3
    S, B = text.shape
    L = S - K + 1
    assert L >= 1, "sequence must be at least as long as the conv kernel (K=3)"
    # TODO(synk): S < K (non-positive valid conv length) is unsupported, as in PyTorch.

    emb_w = params["embedding"].astype(jnp.bfloat16)            # (V, E) bf16
    E = emb_w.shape[1]
    H = params["conv_b"].shape[0]

    # ---- tile selection ------------------------------------------------------
    TS = ts if S >= ts else -(-S // 16) * 16
    TB = min(tb, B)
    if B > 8:
        TB = min(TB, -(-B // 2))        # >= 2 batch tiles so v7x's 2nd TC has work
    TB = max(8, -(-TB // 8) * 8)        # multiple of 8: layout-safe output block

    # VMEM budget: v7x has 64 MiB physical (vs 128 MiB on v5e/v6e); keep the per-step
    # working set well under the (raised) scoped limit.
    vmem_limit = min(_vmem_cap_bytes() * 3 // 4, 96 << 20)
    budget = vmem_limit // 2

    def _est(tb_, ts_):   # rough bytes: 2x-buffered bf16 input + halo/slices + f32 conv
        return tb_ * ts_ * (10 * E + 8 * H)

    while _est(TB, TS) > budget and TS > 64:
        TS = max(64, (TS // 2 // 16) * 16)
    while _est(TB, TS) > budget and TB > 8:
        TB = max(8, (TB // 2 // 8) * 8)

    B_pad = -(-B // TB) * TB
    S_pad = -(-S // TS) * TS
    nb, ns = B_pad // TB, S_pad // TS

    # ---- embedding gather ----------------------------------------------------
    # Pad the cheap int32 ids, not the gathered (B, S, E) bf16 tensor. Pad values are
    # don't-care: conv rows with l >= L are masked to -inf and padded batch rows are
    # sliced off below.
    ids = text
    if (S_pad, B_pad) != (S, B):
        ids = jnp.pad(ids, ((0, S_pad - S), (0, B_pad - B)))
    # TODO(synk): fuse this gather into the kernel (scalar-prefetched ids + VMEM/ANY
    # embedding table) to avoid one full HBM round trip of the (B, S, E) activations.
    x = jnp.take(emb_w, ids.T, axis=0)                          # (B_pad, S_pad, E) bf16

    # Conv weight: PyTorch (H, E, K) -> (K, E, H), one (E, H) matrix per tap, bf16.
    wconv = jnp.transpose(params["conv_w_torch"], (2, 1, 0)).astype(jnp.bfloat16)
    bconv = params["conv_b"].reshape(1, H).astype(jnp.float32)
    wfc = params["fc_w_torch"].reshape(1, H).astype(jnp.float32)
    bfc = params["fc_b"].reshape(1, 1).astype(jnp.float32)

    kernel = functools.partial(cnn_kernel, K=K, TS=TS, L=L)
    out = pl.pallas_call(
        kernel,
        out_shape=jax.ShapeDtypeStruct((B_pad, 1), jnp.float32),
        grid_spec=pltpu.PrefetchScalarGridSpec(
            num_scalar_prefetch=0,
            grid=(nb, ns),
            in_specs=[
                pl.BlockSpec((TB, TS, E), lambda b, s: (b, s, 0)),
                pl.BlockSpec((K, E, H), lambda b, s: (0, 0, 0)),
                pl.BlockSpec((1, H), lambda b, s: (0, 0)),
                pl.BlockSpec((1, H), lambda b, s: (0, 0)),
                pl.BlockSpec((1, 1), lambda b, s: (0, 0)),
            ],
            out_specs=pl.BlockSpec((TB, 1), lambda b, s: (b, 0)),
            scratch_shapes=[
                pltpu.VMEM((TB, K - 1, E), jnp.bfloat16),   # seq halo carry
                pltpu.VMEM((TB, H), jnp.float32),           # running max accumulator
            ]),
        compiler_params=pltpu.CompilerParams(
            dimension_semantics=("parallel", "arbitrary"),
            vmem_limit_bytes=vmem_limit),
    )(x, wconv, bconv, wfc, bfc)
    return out[:B]


def init_params(key, input_dim, embedding_dim, hidden_dim, pad_idx):
    k1, k2, k3, k4, k5 = jax.random.split(key, 5)
    emb = jax.random.normal(k1, (input_dim, embedding_dim), jnp.float32) * 0.1
    emb = emb.at[pad_idx].set(0.0)                      # padding_idx row is zero
    conv_w = jax.random.normal(k2, (hidden_dim, embedding_dim, 3),
                               jnp.float32) * 0.1       # PyTorch (H, E, K)
    conv_b = jax.random.normal(k3, (hidden_dim,), jnp.float32) * 0.1
    fc_w = jax.random.normal(k4, (1, hidden_dim), jnp.float32) * 0.1   # (1, H)
    fc_b = jax.random.normal(k5, (1,), jnp.float32) * 0.1
    return {"embedding": emb, "conv_w_torch": conv_w, "conv_b": conv_b,
            "fc_w_torch": fc_w, "fc_b": fc_b}


def ref_forward(text, params):
    """Pure-JAX f32 reference matching the PyTorch forward exactly."""
    emb = jnp.take(params["embedding"], text, axis=0)        # (S, B, E)
    x = jnp.transpose(emb, (1, 2, 0))                        # (B, E, S)  NCL
    conved = jax.lax.conv_general_dilated(
        x, params["conv_w_torch"], window_strides=(1,), padding="VALID",
        dimension_numbers=("NCH", "OIH", "NCH"))
    conved = conved + params["conv_b"][None, :, None]
    pooled = jnp.max(conved, axis=2)                         # (B, H)
    return pooled @ params["fc_w_torch"].T + params["fc_b"]  # (B, 1)


if __name__ == "__main__":
    # Small, deterministic config.
    input_dim = 50       # vocab size
    embedding_dim = 32
    hidden_dim = 32
    pad_idx = 0

    key = jax.random.PRNGKey(0)
    kp, kt1, kt2 = jax.random.split(key, 3)
    params = init_params(kp, input_dim, embedding_dim, hidden_dim, pad_idx)

    # Test 1: defaults (large-tile config clamps TS to the full 48-row sequence).
    S1, B1 = 48, 2
    text1 = jax.random.randint(kt1, (S1, B1), 0, input_dim, jnp.int32)
    lens1 = jnp.full((B1,), S1, jnp.int32)                   # unused by forward
    out1 = jax.block_until_ready(cnn_forward(text1, lens1, params))
    ref1 = ref_forward(text1, params)
    assert out1.shape == (B1, 1)
    # bf16 activations/weights into the MXU -> slightly looser tolerance than f32.
    assert jnp.allclose(out1, ref1, atol=3e-2, rtol=3e-2), (out1, ref1)

    # Test 2: multi seq tiles (halo carry + interior fast path + masked edge tiles)
    # and multiple batch tiles with batch padding.
    S2, B2 = 48, 10
    text2 = jax.random.randint(kt2, (S2, B2), 0, input_dim, jnp.int32)
    lens2 = jnp.full((B2,), S2, jnp.int32)
    out2 = jax.block_until_ready(cnn_forward(text2, lens2, params, tb=8, ts=16))
    ref2 = ref_forward(text2, params)
    assert out2.shape == (B2, 1)
    assert jnp.allclose(out2, ref2, atol=3e-2, rtol=3e-2), (out2, ref2)

    print("KERNEL_OK")
</pallas_src>

<mosaic_0001>
module attributes {stable_mosaic.version = 11 : i64} {
  func.func @cnn_kernel(%arg0: i32, %arg1: i32, %arg2: memref<8x48x32xbf16, #tpu.memory_space<vmem>>, %arg3: memref<3x32x32xbf16, #tpu.memory_space<vmem>>, %arg4: memref<1x32xf32, #tpu.memory_space<vmem>>, %arg5: memref<1x32xf32, #tpu.memory_space<vmem>>, %arg6: memref<1x1xf32, #tpu.memory_space<vmem>>, %arg7: memref<8x1xf32, #tpu.memory_space<vmem>>, %arg8: memref<8x2x32xbf16, #tpu.memory_space<vmem>>, %arg9: memref<8x32xf32, #tpu.memory_space<vmem>>) attributes {dimension_semantics = [#tpu.dimension_semantics<parallel>, #tpu.dimension_semantics<arbitrary>], iteration_bounds = array<i64: 1, 1>, scalar_prefetch = 0 : i64, scratch_operands = 2 : i64, tpu.core_type = #tpu.core_type<tc>, window_params = [{transform_indices = @transform_0, window_bounds = array<i64: 8, 48, 32>}, {pipeline_mode = #tpu.pipeline_mode<synchronous>, transform_indices = @transform_1, window_bounds = array<i64: 3, 32, 32>}, {pipeline_mode = #tpu.pipeline_mode<synchronous>, transform_indices = @transform_2, window_bounds = array<i64: 1, 32>}, {pipeline_mode = #tpu.pipeline_mode<synchronous>, transform_indices = @transform_3, window_bounds = array<i64: 1, 32>}, {pipeline_mode = #tpu.pipeline_mode<synchronous>, transform_indices = @transform_4, window_bounds = array<i64: 1, 1>}, {transform_indices = @transform_5, window_bounds = array<i64: 8, 1>}]} {
    %c0_i32 = arith.constant 0 : i32
    %0 = arith.cmpi eq, %arg1, %c0_i32 : i32
    %1 = arith.extui %0 : i1 to i32
    %c0_i32_0 = arith.constant 0 : i32
    %2 = arith.cmpi ne, %1, %c0_i32_0 : i32
    scf.if %2 {
      %cst_24 = arith.constant 0.000000e+00 : bf16
      %37 = vector.broadcast %cst_24 : bf16 to vector<8x2x32xbf16>
      %c0_25 = arith.constant 0 : index
      %c0_26 = arith.constant 0 : index
      %c0_27 = arith.constant 0 : index
      %38 = vector.load %arg8[%c0_25, %c0_26, %c0_27] : memref<8x2x32xbf16, #tpu.memory_space<vmem>>, vector<8x2x32xbf16>
      tpu.vector_store %arg8[%c0_25, %c0_26, %c0_27], %37 {strides = array<i32>} : memref<8x2x32xbf16, #tpu.memory_space<vmem>>, vector<8x2x32xbf16>,
      %cst_28 = arith.constant 0xFF800000 : f32
      %39 = vector.broadcast %cst_28 : f32 to vector<8x32xf32>
      %c0_29 = arith.constant 0 : index
      %c0_30 = arith.constant 0 : index
      %40 = vector.load %arg9[%c0_29, %c0_30] : memref<8x32xf32, #tpu.memory_space<vmem>>, vector<8x32xf32>
      tpu.vector_store %arg9[%c0_29, %c0_30], %39 {strides = array<i32>} : memref<8x32xf32, #tpu.memory_space<vmem>>, vector<8x32xf32>,
    } else {
    }
    %c0 = arith.constant 0 : index
    %c0_1 = arith.constant 0 : index
    %c0_2 = arith.constant 0 : index
    %3 = vector.load %arg2[%c0, %c0_1, %c0_2] : memref<8x48x32xbf16, #tpu.memory_space<vmem>>, vector<8x48x32xbf16>
    %c0_3 = arith.constant 0 : index
    %c0_4 = arith.constant 0 : index
    %c0_5 = arith.constant 0 : index
    %4 = vector.load %arg8[%c0_3, %c0_4, %c0_5] : memref<8x2x32xbf16, #tpu.memory_space<vmem>>, vector<8x2x32xbf16>
    %5 = tpu.concatenate %4, %3 in 1 : vector<8x2x32xbf16>, vector<8x48x32xbf16> -> vector<8x50x32xbf16>
    %6 = vector.extract_strided_slice %5 {offsets = [0, 0, 0], sizes = [8, 48, 32], strides = [1, 1, 1]} : vector<8x50x32xbf16> to vector<8x48x32xbf16>
    %7 = vector.shape_cast %6 : vector<8x48x32xbf16> to vector<384x32xbf16>
    %c0_6 = arith.constant 0 : index
    %c0_7 = arith.constant 0 : index
    %c0_8 = arith.constant 0 : index
    %8 = vector.load %arg3[%c0_6, %c0_7, %c0_8] : memref<3x32x32xbf16, #tpu.memory_space<vmem>>, vector<1x32x32xbf16>
    %9 = vector.shape_cast %8 : vector<1x32x32xbf16> to vector<32x32xbf16>
    %cst = arith.constant dense<0.000000e+00> : vector<384x32xf32>
    %10 = tpu.matmul %7, %9, %cst {dimension_numbers = #tpu.dot_dimension_numbers<[1], [0], [0], [1], [0, 0, 1, 1], [], []>} : vector<384x32xbf16>, vector<32x32xbf16>, vector<384x32xf32> -> vector<384x32xf32>
    %11 = vector.extract_strided_slice %5 {offsets = [0, 1, 0], sizes = [8, 48, 32], strides = [1, 1, 1]} : vector<8x50x32xbf16> to vector<8x48x32xbf16>
    %12 = vector.shape_cast %11 : vector<8x48x32xbf16> to vector<384x32xbf16>
    %c1 = arith.constant 1 : index
    %c0_9 = arith.constant 0 : index
    %c0_10 = arith.constant 0 : index
    %13 = vector.load %arg3[%c1, %c0_9, %c0_10] : memref<3x32x32xbf16, #tpu.memory_space<vmem>>, vector<1x32x32xbf16>
    %14 = vector.shape_cast %13 : vector<1x32x32xbf16> to vector<32x32xbf16>
    %cst_11 = arith.constant dense<0.000000e+00> : vector<384x32xf32>
    %15 = tpu.matmul %12, %14, %cst_11 {dimension_numbers = #tpu.dot_dimension_numbers<[1], [0], [0], [1], [0, 0, 1, 1], [], []>} : vector<384x32xbf16>, vector<32x32xbf16>, vector<384x32xf32> -> vector<384x32xf32>
    %16 = arith.addf %10, %15 : vector<384x32xf32>
    %17 = vector.extract_strided_slice %5 {offsets = [0, 2, 0], sizes = [8, 48, 32], strides = [1, 1, 1]} : vector<8x50x32xbf16> to vector<8x48x32xbf16>
    %18 = vector.shape_cast %17 : vector<8x48x32xbf16> to vector<384x32xbf16>
    %c2 = arith.constant 2 : index
    %c0_12 = arith.constant 0 : index
    %c0_13 = arith.constant 0 : index
    %19 = vector.load %arg3[%c2, %c0_12, %c0_13] : memref<3x32x32xbf16, #tpu.memory_space<vmem>>, vector<1x32x32xbf16>
    %20 = vector.shape_cast %19 : vector<1x32x32xbf16> to vector<32x32xbf16>
    %cst_14 = arith.constant dense<0.000000e+00> : vector<384x32xf32>
    %21 = tpu.matmul %18, %20, %cst_14 {dimension_numbers = #tpu.dot_dimension_numbers<[1], [0], [0], [1], [0, 0, 1, 1], [], []>} : vector<384x32xbf16>, vector<32x32xbf16>, vector<384x32xf32> -> vector<384x32xf32>
    %22 = arith.addf %16, %21 : vector<384x32xf32>
    %23 = vector.shape_cast %22 : vector<384x32xf32> to vector<8x48x32xf32>
    %24 = vector.extract_strided_slice %3 {offsets = [0, 46, 0], sizes = [8, 2, 32], strides = [1, 1, 1]} : vector<8x48x32xbf16> to vector<8x2x32xbf16>
    %c0_15 = arith.constant 0 : index
    %c0_16 = arith.constant 0 : index
    %c0_17 = arith.constant 0 : index
    %25 = vector.load %arg8[%c0_15, %c0_16, %c0_17] : memref<8x2x32xbf16, #tpu.memory_space<vmem>>, vector<8x2x32xbf16>
    tpu.vector_store %arg8[%c0_15, %c0_16, %c0_17], %24 {strides = array<i32>} : memref<8x2x32xbf16, #tpu.memory_space<vmem>>, vector<8x2x32xbf16>,
    %c0_i32_18 = arith.constant 0 : i32
    %26 = arith.cmpi eq, %arg1, %c0_i32_18 : i32
    %c0_i32_19 = arith.constant 0 : i32
    %27 = arith.cmpi eq, %arg1, %c0_i32_19 : i32
    %28 = arith.ori %26, %27 : i1
    %29 = arith.extui %28 : i1 to i32
    %c0_i32_20 = arith.constant 0 : i32
    %30 = arith.cmpi ne, %29, %c0_i32_20 : i32
    scf.if %30 {
      %c48_i32 = arith.constant 48 : i32
      %37 = arith.muli %arg1, %c48_i32 : i32
      %c2_i32 = arith.constant 2 : i32
      %38 = arith.subi %37, %c2_i32 : i32
      %39 = tpu.iota {dimensions = array<i32: 1>} : vector<1x48x1xi32>
      %40 = vector.broadcast %38 : i32 to vector<1x48x1xi32>
      %41 = arith.addi %40, %39 : vector<1x48x1xi32>
      %c0_i32_24 = arith.constant 0 : i32
      %42 = vector.broadcast %c0_i32_24 : i32 to vector<1x48x1xi32>
      %43 = arith.cmpi sge, %41, %42 : vector<1x48x1xi32>
      %c46_i32 = arith.constant 46 : i32
      %44 = vector.broadcast %c46_i32 : i32 to vector<1x48x1xi32>
      %45 = arith.cmpi slt, %41, %44 : vector<1x48x1xi32>
      %46 = arith.andi %43, %45 : vector<1x48x1xi1>
      %cst_25 = arith.constant 0xFF800000 : f32
      %47 = vector.shape_cast %46 : vector<1x48x1xi1> to vector<1x48x1xi1>
      %48 = vector.broadcast %47 : vector<1x48x1xi1> to vector<8x48x32xi1>
      %49 = vector.broadcast %cst_25 : f32 to vector<8x48x32xf32>
      %50 = arith.select %48, %23, %49 : vector<8x48x32xi1>, vector<8x48x32xf32>
      %c0_26 = arith.constant 0 : index
      %c0_27 = arith.constant 0 : index
      %51 = vector.load %arg9[%c0_26, %c0_27] : memref<8x32xf32, #tpu.memory_space<vmem>>, vector<8x32xf32>
      %cst_28 = arith.constant dense<0xFF800000> : vector<8x32xf32>
      %52 = vector.multi_reduction <maximumf>, %50, %cst_28 [1] : vector<8x48x32xf32> to vector<8x32xf32>
      %53 = arith.maximumf %51, %52 : vector<8x32xf32>
      %c0_29 = arith.constant 0 : index
      %c0_30 = arith.constant 0 : index
      %54 = vector.load %arg9[%c0_29, %c0_30] : memref<8x32xf32, #tpu.memory_space<vmem>>, vector<8x32xf32>
      tpu.vector_store %arg9[%c0_29, %c0_30], %53 {strides = array<i32>} : memref<8x32xf32, #tpu.memory_space<vmem>>, vector<8x32xf32>,
    } else {
    }
    %true = arith.constant true
    %31 = arith.xori %28, %true : i1
    %32 = arith.extui %31 : i1 to i32
    %c0_i32_21 = arith.constant 0 : i32
    %33 = arith.cmpi ne, %32, %c0_i32_21 : i32
    scf.if %33 {
      %c0_24 = arith.constant 0 : index
      %c0_25 = arith.constant 0 : index
      %37 = vector.load %arg9[%c0_24, %c0_25] : memref<8x32xf32, #tpu.memory_space<vmem>>, vector<8x32xf32>
      %cst_26 = arith.constant dense<0xFF800000> : vector<8x32xf32>
      %38 = vector.multi_reduction <maximumf>, %23, %cst_26 [1] : vector<8x48x32xf32> to vector<8x32xf32>
      %39 = arith.maximumf %37, %38 : vector<8x32xf32>
      %c0_27 = arith.constant 0 : index
      %c0_28 = arith.constant 0 : index
      %40 = vector.load %arg9[%c0_27, %c0_28] : memref<8x32xf32, #tpu.memory_space<vmem>>, vector<8x32xf32>
      tpu.vector_store %arg9[%c0_27, %c0_28], %39 {strides = array<i32>} : memref<8x32xf32, #tpu.memory_space<vmem>>, vector<8x32xf32>,
    } else {
    }
    %c0_i32_22 = arith.constant 0 : i32
    %34 = arith.cmpi eq, %arg1, %c0_i32_22 : i32
    %35 = arith.extui %34 : i1 to i32
    %c0_i32_23 = arith.constant 0 : i32
    %36 = arith.cmpi ne, %35, %c0_i32_23 : i32
    scf.if %36 {
      %c0_24 = arith.constant 0 : index
      %c0_25 = arith.constant 0 : index
      %37 = vector.load %arg9[%c0_24, %c0_25] : memref<8x32xf32, #tpu.memory_space<vmem>>, vector<8x32xf32>
      %c0_26 = arith.constant 0 : index
      %c0_27 = arith.constant 0 : index
      %38 = vector.load %arg4[%c0_26, %c0_27] : memref<1x32xf32, #tpu.memory_space<vmem>>, vector<1x32xf32>
      %39 = vector.broadcast %38 : vector<1x32xf32> to vector<8x32xf32>
      %40 = arith.addf %37, %39 : vector<8x32xf32>
      %c0_28 = arith.constant 0 : index
      %c0_29 = arith.constant 0 : index
      %41 = vector.load %arg5[%c0_28, %c0_29] : memref<1x32xf32, #tpu.memory_space<vmem>>, vector<1x32xf32>
      %42 = vector.broadcast %41 : vector<1x32xf32> to vector<8x32xf32>
      %43 = arith.mulf %40, %42 : vector<8x32xf32>
      %cst_30 = arith.constant dense<0.000000e+00> : vector<8xf32>
      %44 = vector.multi_reduction <add>, %43, %cst_30 [1] : vector<8x32xf32> to vector<8xf32>
      %45 = vector.shape_cast %44 : vector<8xf32> to vector<8x1xf32>
      %c0_31 = arith.constant 0 : index
      %c0_32 = arith.constant 0 : index
      %46 = vector.load %arg6[%c0_31, %c0_32] : memref<1x1xf32, #tpu.memory_space<vmem>>, vector<1x1xf32>
      %47 = vector.broadcast %46 : vector<1x1xf32> to vector<8x1xf32>
      %48 = arith.addf %45, %47 : vector<8x1xf32>
      %c0_33 = arith.constant 0 : index
      %c0_34 = arith.constant 0 : index
      %49 = vector.load %arg7[%c0_33, %c0_34] : memref<8x1xf32, #tpu.memory_space<vmem>>, vector<8x1xf32>
      tpu.vector_store %arg7[%c0_33, %c0_34], %48 {strides = array<i32>} : memref<8x1xf32, #tpu.memory_space<vmem>>, vector<8x1xf32>,
    } else {
    }
    return
  }
  func.func @transform_0(%arg0: i32, %arg1: i32) -> (i32, i32, i32) {
    %c0_i32 = arith.constant 0 : i32
    %c0_i32_0 = arith.constant 0 : i32
    return %arg0, %arg1, %c0_i32 : i32, i32, i32
  }
  func.func @transform_1(%arg0: i32, %arg1: i32) -> (i32, i32, i32) {
    %c0_i32 = arith.constant 0 : i32
    %c0_i32_0 = arith.constant 0 : i32
    %c0_i32_1 = arith.constant 0 : i32
    %c0_i32_2 = arith.constant 0 : i32
    return %c0_i32, %c0_i32_0, %c0_i32_1 : i32, i32, i32
  }
  func.func @transform_2(%arg0: i32, %arg1: i32) -> (i32, i32) {
    %c0_i32 = arith.constant 0 : i32
    %c0_i32_0 = arith.constant 0 : i32
    %c0_i32_1 = arith.constant 0 : i32
    return %c0_i32, %c0_i32_0 : i32, i32
  }
  func.func @transform_3(%arg0: i32, %arg1: i32) -> (i32, i32) {
    %c0_i32 = arith.constant 0 : i32
    %c0_i32_0 = arith.constant 0 : i32
    %c0_i32_1 = arith.constant 0 : i32
    return %c0_i32, %c0_i32_0 : i32, i32
  }
  func.func @transform_4(%arg0: i32, %arg1: i32) -> (i32, i32) {
    %c0_i32 = arith.constant 0 : i32
    %c0_i32_0 = arith.constant 0 : i32
    %c0_i32_1 = arith.constant 0 : i32
    return %c0_i32, %c0_i32_0 : i32, i32
  }
  func.func @transform_5(%arg0: i32, %arg1: i32) -> (i32, i32) {
    %c0_i32 = arith.constant 0 : i32
    %c0_i32_0 = arith.constant 0 : i32
    return %arg0, %c0_i32 : i32, i32
  }
}

</mosaic_0001>

<llo_original>
// kernel: tpu_custom_call.1
$region0: #{tpu_custom_call.1}
  #allocation0 [shape = 'u32[]', space=smem, size = 0x4, offset = 0x4, fixed_abs, tag = 'smem constant byte address 0x4 - core index']
  #allocation1 [shape = 'u32[144,128]{1,0:T(1,128)}', space=vmem, size = 0x12000, scoped, tag = 'internal scratch']
  #allocation2 [shape = 'bf16[8,2,32]{2,1,0:T(2,128)(2,1)}', space=vmem, size = 0x1000, scoped, tag = 'scratch operand']
  #allocation3 [shape = 'f32[8,32]{1,0:T(8,128)}', space=vmem, size = 0x1000, scoped, tag = 'scratch operand']
  #allocation4 [shape = 'f32[1,1]{1,0:T(1,128)S(1)}', space=vmem, size = 0x200, scoped, tag = 'scoped memory for tpu_custom_call.1']
  %s0 = inlined_call_operand.vmem [shape: bf16[8,48,32], index: 0, kind: input, shape index: {}]
  %s1 = inlined_call_operand.vmem [shape: bf16[3,32,32], index: 1, kind: input, shape index: {}]
  %s2 = inlined_call_operand.vmem [shape: f32[1,32], index: 2, kind: input, shape index: {}]
  %s3 = inlined_call_operand.vmem [shape: f32[1,32], index: 3, kind: input, shape index: {}]
  %s4 = inlined_call_operand.<no memory space> [shape: f32[1,1], index: 4, kind: input, shape index: {}]
  %s5 = inlined_call_operand.vmem [shape: f32[8,1], index: 5, kind: output, shape index: {}]
  %s6 = sld [smem:[#allocation0]]
  $region46: #{tpu_custom_call.1} parent=0
    _
  %s8 = ssub.s32 1, %s6
  %s9 = scalar_select 0, %s8, %s6
  %v10 = vstv %s4
  %11 = vst [vmem:[#allocation4] sm:$0x1] %v10
  // Predicated region
  $region2: #{tpu_custom_call.1} parent=0 // pred_check
    _
  $region3: #{tpu_custom_call.1} parent=0 // pred_check_branch
    %13 = sbr.rel (0) target = $region5
  $region4: #{tpu_custom_call.1} parent=0 // pred_region
    _
  $region5: #{tpu_custom_call.1} parent=0 // pred_fallthru
    _
  // Predicated region
  $region6: #{tpu_custom_call.1} parent=0 // pred_check
    _
  $region7: #{tpu_custom_call.1} parent=0 // pred_check_branch
    %15 = sbr.rel (0) target = $region9
  $region8: #{tpu_custom_call.1} parent=0 // pred_region
    _
  $region9: #{tpu_custom_call.1} parent=0 // pred_fallthru
    _
  // Predicated region
  $region10: #{tpu_custom_call.1} parent=0 // pred_check
    _
  $region11: #{tpu_custom_call.1} parent=0 // pred_check_branch
    %17 = sbr.rel (0) target = $region13
  $region12: #{tpu_custom_call.1} parent=0 // pred_region
    _
  $region13: #{tpu_custom_call.1} parent=0 // pred_fallthru
    _
  // Predicated region
  $region14: #{tpu_custom_call.1} parent=0 // pred_check
    _
  $region15: #{tpu_custom_call.1} parent=0 // pred_check_branch
    %19 = sbr.rel (0) target = $region17
  $region16: #{tpu_custom_call.1} parent=0 // pred_region
    _
  $region17: #{tpu_custom_call.1} parent=0 // pred_fallthru
    _
  // Predicated region
  $region18: #{tpu_custom_call.1} parent=0 // pred_check
    _
  $region19: #{tpu_custom_call.1} parent=0 // pred_check_branch
    %21 = sbr.rel (0) target = $region21
  $region20: #{tpu_custom_call.1} parent=0 // pred_region
    _
  $region21: #{tpu_custom_call.1} parent=0 // pred_fallthru
    _
  %p23 = scmp.eq.s32.totalorder 0, 0
  // Predicated region
  $region22: #{tpu_custom_call.1} parent=0 // pred_check
    %p24 = pneg %p23
  $region23: #{tpu_custom_call.1} parent=0 // pred_check_branch
    %26 = sbr.rel (%p24) target = $region25
  $region24: #{tpu_custom_call.1} parent=0 // pred_region
    %vm27 = vcmask 253952
    %28 = vst.msk [vmem:[#allocation2] sm:$0x1] %vm27, 0
    %29 = vst.msk [vmem:[#allocation2 + $0x1] sm:$0x1] %vm27, 0
    %30 = vst.msk [vmem:[#allocation2 + $0x2] sm:$0x1] %vm27, 0
    %31 = vst.msk [vmem:[#allocation2 + $0x3] sm:$0x1] %vm27, 0
    %32 = vst.msk [vmem:[#allocation2 + $0x4] sm:$0x1] %vm27, 0
    %33 = vst.msk [vmem:[#allocation2 + $0x5] sm:$0x1] %vm27, 0
    %34 = vst.msk [vmem:[#allocation2 + $0x6] sm:$0x1] %vm27, 0
    %35 = vst.msk [vmem:[#allocation2 + $0x7] sm:$0x1] %vm27, 0
    %vm36 = vcmask 261120
    %37 = vst.msk [vmem:[#allocation3] sm:$0xff] %vm36, -inf
  $region25: #{tpu_custom_call.1} parent=0 // pred_fallthru
    _
  %v38 = vld [vmem:[%s0] sm:$0xf]
  %v39 = vld [vmem:[%s0 + $0x4] sm:$0xf]
  %v40 = vld [vmem:[%s0 + $0x8] sm:$0xf]
  %v41 = vld [vmem:[%s0 + $0xc] sm:$0xf]
  %v42 = vld [vmem:[%s0 + $0x10] sm:$0xf]
  %v43 = vld [vmem:[%s0 + $0x14] sm:$0xf]
  %v44 = vld [vmem:[%s0 + $0x18] sm:$0xf]
  %v45 = vld [vmem:[%s0 + $0x1c] sm:$0xf]
  %v46 = vld [vmem:[%s0 + $0x20] sm:$0xf]
  %v47 = vld [vmem:[%s0 + $0x24] sm:$0xf]
  %v48 = vld [vmem:[%s0 + $0x28] sm:$0xf]
  %v49 = vld [vmem:[%s0 + $0x2c] sm:$0xf]
  %v50 = vld [vmem:[%s0 + $0x30] sm:$0xf]
  %v51 = vld [vmem:[%s0 + $0x34] sm:$0xf]
  %v52 = vld [vmem:[%s0 + $0x38] sm:$0xf]
  %v53 = vld [vmem:[%s0 + $0x3c] sm:$0xf]
  %v54 = vld [vmem:[%s0 + $0x40] sm:$0xf]
  %v55 = vld [vmem:[%s0 + $0x44] sm:$0xf]
  %v56 = vld [vmem:[%s0 + $0x48] sm:$0xf]
  %v57 = vld [vmem:[%s0 + $0x4c] sm:$0xf]
  %v58 = vld [vmem:[%s0 + $0x50] sm:$0xf]
  %v59 = vld [vmem:[%s0 + $0x54] sm:$0xf]
  %v60 = vld [vmem:[%s0 + $0x58] sm:$0xf]
  %v61 = vld [vmem:[%s0 + $0x5c] sm:$0xf]
  %v62 = vld [vmem:[%s0 + $0x60] sm:$0xf]
  %v63 = vld [vmem:[%s0 + $0x64] sm:$0xf]
  %v64 = vld [vmem:[%s0 + $0x68] sm:$0xf]
  %v65 = vld [vmem:[%s0 + $0x6c] sm:$0xf]
  %v66 = vld [vmem:[%s0 + $0x70] sm:$0xf]
  %v67 = vld [vmem:[%s0 + $0x74] sm:$0xf]
  %v68 = vld [vmem:[%s0 + $0x78] sm:$0xf]
  %v69 = vld [vmem:[%s0 + $0x7c] sm:$0xf]
  %v70 = vld [vmem:[%s0 + $0x80] sm:$0xf]
  %v71 = vld [vmem:[%s0 + $0x84] sm:$0xf]
  %v72 = vld [vmem:[%s0 + $0x88] sm:$0xf]
  %v73 = vld [vmem:[%s0 + $0x8c] sm:$0xf]
  %v74 = vld [vmem:[%s0 + $0x90] sm:$0xf]
  %v75 = vld [vmem:[%s0 + $0x94] sm:$0xf]
  %v76 = vld [vmem:[%s0 + $0x98] sm:$0xf]
  %v77 = vld [vmem:[%s0 + $0x9c] sm:$0xf]
  %v78 = vld [vmem:[%s0 + $0xa0] sm:$0xf]
  %v79 = vld [vmem:[%s0 + $0xa4] sm:$0xf]
  %v80 = vld [vmem:[%s0 + $0xa8] sm:$0xf]
  %v81 = vld [vmem:[%s0 + $0xac] sm:$0xf]
  %v82 = vld [vmem:[%s0 + $0xb0] sm:$0xf]
  %v83 = vld [vmem:[%s0 + $0xb4] sm:$0xf]
  %v84 = vld [vmem:[%s0 + $0xb8] sm:$0xf]
  %v85 = vld [vmem:[%s0 + $0xbc] sm:$0xf]
  %v86 = vld [vmem:[#allocation2] sm:$0x1]
  %v87 = vld [vmem:[#allocation2 + $0x1] sm:$0x1]
  %v88 = vld [vmem:[#allocation2 + $0x2] sm:$0x1]
  %v89 = vld [vmem:[#allocation2 + $0x3] sm:$0x1]
  %v90 = vld [vmem:[#allocation2 + $0x4] sm:$0x1]
  %v91 = vld [vmem:[#allocation2 + $0x5] sm:$0x1]
  %v92 = vld [vmem:[#allocation2 + $0x6] sm:$0x1]
  %v93 = vld [vmem:[#allocation2 + $0x7] sm:$0x1]
  %v142 = vunpack.c.l.b16 %v38
  %v143 = vunpack.c.l.b16 %v39
  %v144 = vunpack.c.l.b16 %v40
  %v145 = vunpack.c.l.b16 %v41
  %v146 = vunpack.c.l.b16 %v42
  %v147 = vunpack.c.l.b16 %v43
  %v148 = vunpack.c.l.b16 %v44
  %v149 = vunpack.c.l.b16 %v45
  %v150 = vunpack.c.l.b16 %v46
  %v151 = vunpack.c.l.b16 %v47
  %v152 = vunpack.c.l.b16 %v48
  %v153 = vunpack.c.l.b16 %v49
  %v154 = vunpack.c.l.b16 %v50
  %v155 = vunpack.c.l.b16 %v51
  %v156 = vunpack.c.l.b16 %v52
  %v157 = vunpack.c.l.b16 %v53
  %v158 = vunpack.c.l.b16 %v54
  %v159 = vunpack.c.l.b16 %v55
  %v160 = vunpack.c.l.b16 %v56
  %v161 = vunpack.c.l.b16 %v57
  %v162 = vunpack.c.l.b16 %v58
  %v163 = vunpack.c.l.b16 %v59
  %v164 = vunpack.c.l.b16 %v60
  %v165 = vunpack.c.l.b16 %v61
  %v166 = vunpack.c.l.b16 %v62
  %v167 = vunpack.c.l.b16 %v63
  %v168 = vunpack.c.l.b16 %v64
  %v169 = vunpack.c.l.b16 %v65
  %v170 = vunpack.c.l.b16 %v66
  %v171 = vunpack.c.l.b16 %v67
  %v172 = vunpack.c.l.b16 %v68
  %v173 = vunpack.c.l.b16 %v69
  %v174 = vunpack.c.l.b16 %v70
  %v175 = vunpack.c.l.b16 %v71
  %v176 = vunpack.c.l.b16 %v72
  %v177 = vunpack.c.l.b16 %v73
  %v178 = vunpack.c.l.b16 %v74
  %v179 = vunpack.c.l.b16 %v75
  %v180 = vunpack.c.l.b16 %v76
  %v181 = vunpack.c.l.b16 %v77
  %v182 = vunpack.c.l.b16 %v78
  %v183 = vunpack.c.l.b16 %v79
  %v184 = vunpack.c.l.b16 %v80
  %v185 = vunpack.c.l.b16 %v81
  %v186 = vunpack.c.l.b16 %v82
  %v187 = vunpack.c.l.b16 %v83
  %v188 = vunpack.c.l.b16 %v84
  %v189 = vunpack.c.l.b16 %v85
  %v190 = vpack.c.b16 %v143, %v142
  %v191 = vpack.c.b16 %v145, %v144
  %v192 = vpack.c.b16 %v147, %v146
  %v193 = vpack.c.b16 %v149, %v148
  %v194 = vpack.c.b16 %v151, %v150
  %v195 = vpack.c.b16 %v153, %v152
  %v196 = vpack.c.b16 %v155, %v154
  %v197 = vpack.c.b16 %v157, %v156
  %v198 = vpack.c.b16 %v159, %v158
  %v199 = vpack.c.b16 %v161, %v160
  %v200 = vpack.c.b16 %v163, %v162
  %v201 = vpack.c.b16 %v165, %v164
  %v202 = vpack.c.b16 %v167, %v166
  %v203 = vpack.c.b16 %v169, %v168
  %v204 = vpack.c.b16 %v171, %v170
  %v205 = vpack.c.b16 %v173, %v172
  %v206 = vpack.c.b16 %v175, %v174
  %v207 = vpack.c.b16 %v177, %v176
  %v208 = vpack.c.b16 %v179, %v178
  %v209 = vpack.c.b16 %v181, %v180
  %v210 = vpack.c.b16 %v183, %v182
  %v211 = vpack.c.b16 %v185, %v184
  %v212 = vpack.c.b16 %v187, %v186
  %v213 = vpack.c.b16 %v189, %v188
  %vm214 = vcmask 1040384
  %v215 = vrot.slane %v190, 7
  %v216 = vrot.slane %v191, 7
  %v217 = vsel %vm214, %v215, %v216
  %v218 = vrot.slane %v192, 7
  %v219 = vsel %vm214, %v216, %v218
  %v220 = vrot.slane %v193, 7
  %v221 = vrot.slane %v194, 7
  %v222 = vsel %vm214, %v220, %v221
  %v223 = vrot.slane %v195, 7
  %v224 = vsel %vm214, %v221, %v223
  %v225 = vrot.slane %v196, 7
  %v226 = vrot.slane %v197, 7
  %v227 = vsel %vm214, %v225, %v226
  %v228 = vrot.slane %v198, 7
  %v229 = vsel %vm214, %v226, %v228
  %v230 = vrot.slane %v199, 7
  %v231 = vrot.slane %v200, 7
  %v232 = vsel %vm214, %v230, %v231
  %v233 = vrot.slane %v201, 7
  %v234 = vsel %vm214, %v231, %v233
  %v235 = vrot.slane %v202, 7
  %v236 = vrot.slane %v203, 7
  %v237 = vsel %vm214, %v235, %v236
  %v238 = vrot.slane %v204, 7
  %v239 = vsel %vm214, %v236, %v238
  %v240 = vrot.slane %v205, 7
  %v241 = vrot.slane %v206, 7
  %v242 = vsel %vm214, %v240, %v241
  %v243 = vrot.slane %v207, 7
  %v244 = vsel %vm214, %v241, %v243
  %v245 = vrot.slane %v208, 7
  %v246 = vrot.slane %v209, 7
  %v247 = vsel %vm214, %v245, %v246
  %v248 = vrot.slane %v210, 7
  %v249 = vsel %vm214, %v246, %v248
  %v250 = vrot.slane %v211, 7
  %v251 = vrot.slane %v212, 7
  %v252 = vsel %vm214, %v250, %v251
  %v253 = vrot.slane %v213, 7
  %v254 = vsel %vm214, %v251, %v253
  %vm255 = vcmask 1040384
  %v258 = vsel %vm255, %v86, %v215
  %v261 = vsel %vm255, %v87, %v220
  %v264 = vsel %vm255, %v88, %v225
  %v267 = vsel %vm255, %v89, %v230
  %v270 = vsel %vm255, %v90, %v235
  %v273 = vsel %vm255, %v91, %v240
  %v276 = vsel %vm255, %v92, %v245
  %v279 = vsel %vm255, %v93, %v250
  %v280 = vld [vmem:[%s1] sm:$0xf]
  %v281 = vld [vmem:[%s1 + $0x4] sm:$0xf]
  %v282 = vld [vmem:[%s1 + $0x8] sm:$0xf]
  %v283 = vld [vmem:[%s1 + $0xc] sm:$0xf]
  %vm284 = vsmask.f32 7424
  %v285 = vshrl.u32 %v258, 16
  %v287 = vshll.u32 %v258, 16
  %v289 = vrot.slane %v287, 1
  %v290 = vor.u32 %v285, %v289
  %v292 = vshll.u32 %v217, 16
  %v294 = vrot.slane %v292, 1
  %v295 = vsel %vm284, %v290, %v294
  %v296 = vshrl.u32 %v217, 16
  %v298 = vor.u32 %v296, %v294
  %v300 = vshll.u32 %v219, 16
  %v302 = vrot.slane %v300, 1
  %v303 = vsel %vm284, %v298, %v302
  %v304 = vshrl.u32 %v219, 16
  %v306 = vor.u32 %v304, %v302
  %v308 = vshll.u32 %v218, 16
  %v310 = vrot.slane %v308, 1
  %v311 = vsel %vm284, %v306, %v310
  %v312 = vshrl.u32 %v261, 16
  %v314 = vshll.u32 %v261, 16
  %v316 = vrot.slane %v314, 1
  %v317 = vor.u32 %v312, %v316
  %v319 = vshll.u32 %v222, 16
  %v321 = vrot.slane %v319, 1
  %v322 = vsel %vm284, %v317, %v321
  %v323 = vshrl.u32 %v222, 16
  %v325 = vor.u32 %v323, %v321
  %v327 = vshll.u32 %v224, 16
  %v329 = vrot.slane %v327, 1
  %v330 = vsel %vm284, %v325, %v329
  %v331 = vshrl.u32 %v224, 16
  %v333 = vor.u32 %v331, %v329
  %v335 = vshll.u32 %v223, 16
  %v337 = vrot.slane %v335, 1
  %v338 = vsel %vm284, %v333, %v337
  %v339 = vshrl.u32 %v264, 16
  %v341 = vshll.u32 %v264, 16
  %v343 = vrot.slane %v341, 1
  %v344 = vor.u32 %v339, %v343
  %v346 = vshll.u32 %v227, 16
  %v348 = vrot.slane %v346, 1
  %v349 = vsel %vm284, %v344, %v348
  %v350 = vshrl.u32 %v227, 16
  %v352 = vor.u32 %v350, %v348
  %v354 = vshll.u32 %v229, 16
  %v356 = vrot.slane %v354, 1
  %v357 = vsel %vm284, %v352, %v356
  %v358 = vshrl.u32 %v229, 16
  %v360 = vor.u32 %v358, %v356
  %v362 = vshll.u32 %v228, 16
  %v364 = vrot.slane %v362, 1
  %v365 = vsel %vm284, %v360, %v364
  %v366 = vshrl.u32 %v267, 16
  %v368 = vshll.u32 %v267, 16
  %v370 = vrot.slane %v368, 1
  %v371 = vor.u32 %v366, %v370
  %v373 = vshll.u32 %v232, 16
  %v375 = vrot.slane %v373, 1
  %v376 = vsel %vm284, %v371, %v375
  %v377 = vshrl.u32 %v232, 16
  %v379 = vor.u32 %v377, %v375
  %v381 = vshll.u32 %v234, 16
  %v383 = vrot.slane %v381, 1
  %v384 = vsel %vm284, %v379, %v383
  %v385 = vshrl.u32 %v234, 16
  %v387 = vor.u32 %v385, %v383
  %v389 = vshll.u32 %v233, 16
  %v391 = vrot.slane %v389, 1
  %v392 = vsel %vm284, %v387, %v391
  %v393 = vshrl.u32 %v270, 16
  %v395 = vshll.u32 %v270, 16
  %v397 = vrot.slane %v395, 1
  %v398 = vor.u32 %v393, %v397
  %v400 = vshll.u32 %v237, 16
  %v402 = vrot.slane %v400, 1
  %v403 = vsel %vm284, %v398, %v402
  %v404 = vshrl.u32 %v237, 16
  %v406 = vor.u32 %v404, %v402
  %v408 = vshll.u32 %v239, 16
  %v410 = vrot.slane %v408, 1
  %v411 = vsel %vm284, %v406, %v410
  %v412 = vshrl.u32 %v239, 16
  %v414 = vor.u32 %v412, %v410
  %v416 = vshll.u32 %v238, 16
  %v418 = vrot.slane %v416, 1
  %v419 = vsel %vm284, %v414, %v418
  %v420 = vshrl.u32 %v273, 16
  %v422 = vshll.u32 %v273, 16
  %v424 = vrot.slane %v422, 1
  %v425 = vor.u32 %v420, %v424
  %v427 = vshll.u32 %v242, 16
  %v429 = vrot.slane %v427, 1
  %v430 = vsel %vm284, %v425, %v429
  %v431 = vshrl.u32 %v242, 16
  %v433 = vor.u32 %v431, %v429
  %v435 = vshll.u32 %v244, 16
  %v437 = vrot.slane %v435, 1
  %v438 = vsel %vm284, %v433, %v437
  %v439 = vshrl.u32 %v244, 16
  %v441 = vor.u32 %v439, %v437
  %v443 = vshll.u32 %v243, 16
  %v445 = vrot.slane %v443, 1
  %v446 = vsel %vm284, %v441, %v445
  %v447 = vshrl.u32 %v276, 16
  %v449 = vshll.u32 %v276, 16
  %v451 = vrot.slane %v449, 1
  %v452 = vor.u32 %v447, %v451
  %v454 = vshll.u32 %v247, 16
  %v456 = vrot.slane %v454, 1
  %v457 = vsel %vm284, %v452, %v456
  %v458 = vshrl.u32 %v247, 16
  %v460 = vor.u32 %v458, %v456
  %v462 = vshll.u32 %v249, 16
  %v464 = vrot.slane %v462, 1
  %v465 = vsel %vm284, %v460, %v464
  %v466 = vshrl.u32 %v249, 16
  %v468 = vor.u32 %v466, %v464
  %v470 = vshll.u32 %v248, 16
  %v472 = vrot.slane %v470, 1
  %v473 = vsel %vm284, %v468, %v472
  %v474 = vshrl.u32 %v279, 16
  %v476 = vshll.u32 %v279, 16
  %v478 = vrot.slane %v476, 1
  %v479 = vor.u32 %v474, %v478
  %v481 = vshll.u32 %v252, 16
  %v483 = vrot.slane %v481, 1
  %v484 = vsel %vm284, %v479, %v483
  %v485 = vshrl.u32 %v252, 16
  %v487 = vor.u32 %v485, %v483
  %v489 = vshll.u32 %v254, 16
  %v491 = vrot.slane %v489, 1
  %v492 = vsel %vm284, %v487, %v491
  %v493 = vshrl.u32 %v254, 16
  %v495 = vor.u32 %v493, %v491
  %v497 = vshll.u32 %v253, 16
  %v499 = vrot.slane %v497, 1
  %v500 = vsel %vm284, %v495, %v499
  %s501 = scalar_lea.vmem %s1, 16
  %v502 = vld [vmem:[%s501] sm:$0xf]
  %v503 = vld [vmem:[%s501 + $0x4] sm:$0xf]
  %v504 = vld [vmem:[%s501 + $0x8] sm:$0xf]
  %v505 = vld [vmem:[%s501 + $0xc] sm:$0xf]
  %v510 = vunpack.c.l.b16 %v502
  %v511 = vunpack.c.l.b16 %v503
  %v512 = vunpack.c.l.b16 %v504
  %v513 = vunpack.c.l.b16 %v505
  %v514 = vpack.c.b16 %v511, %v510
  %v515 = vpack.c.b16 %v513, %v512
  %vm518 = vcmask 261120
  %v520 = vsel %vm518, %v295, 0
  %v523 = vsel %vm518, %v303, 0
  %v526 = vsel %vm518, %v311, 0
  %v529 = vsel %vm518, %v322, 0
  %v532 = vsel %vm518, %v330, 0
  %v535 = vsel %vm518, %v338, 0
  %v538 = vsel %vm518, %v349, 0
  %v541 = vsel %vm518, %v357, 0
  %v544 = vsel %vm518, %v365, 0
  %v547 = vsel %vm518, %v376, 0
  %v550 = vsel %vm518, %v384, 0
  %v553 = vsel %vm518, %v392, 0
  %v556 = vsel %vm518, %v403, 0
  %v559 = vsel %vm518, %v411, 0
  %v562 = vsel %vm518, %v419, 0
  %v565 = vsel %vm518, %v430, 0
  %v568 = vsel %vm518, %v438, 0
  %v571 = vsel %vm518, %v446, 0
  %v574 = vsel %vm518, %v457, 0
  %v577 = vsel %vm518, %v465, 0
  %v580 = vsel %vm518, %v473, 0
  %v583 = vsel %vm518, %v484, 0
  %v586 = vsel %vm518, %v492, 0
  %v589 = vsel %vm518, %v500, 0
  %591 = vmatprep.subr.bf16.mxu0 0
  %592 = vmatpush1.bf16.msra.mxu0 %v514
  %593 = vmatprep.subr.bf16.mxu0 0
  %594 = vmatpush1.bf16.msra.mxu0 %v515
  %595 = vmatprep.subr.bf16.mxu0 0
  %596 = vmatpush1.bf16.msra.mxu0 0
  %597 = vmatprep.subr.bf16.mxu0 0
  %598 = vmatpush1.bf16.msra.mxu0 0
  %599 = vmatprep.subr.bf16.mxu0 0
  %600 = vmatpush1.bf16.msra.mxu0 0
  %601 = vmatprep.subr.bf16.mxu0 0
  %602 = vmatpush1.bf16.msra.mxu0 0
  %603 = vmatprep.subr.bf16.mxu0 0
  %604 = vmatpush1.bf16.msra.mxu0 0
  %605 = vmatprep.subr.bf16.mxu0 0
  %606 = vmatpush1.bf16.msra.mxu0 0
  %607 = vmatprep.subr.bf16.mxu0 0
  %608 = vmatpush1.bf16.msra.mxu0 0
  %609 = vmatprep.subr.bf16.mxu0 0
  %610 = vmatpush1.bf16.msra.mxu0 0
  %611 = vmatprep.subr.bf16.mxu0 0
  %612 = vmatpush1.bf16.msra.mxu0 0
  %613 = vmatprep.subr.bf16.mxu0 0
  %614 = vmatpush1.bf16.msra.mxu0 0
  %615 = vmatprep.subr.bf16.mxu0 0
  %616 = vmatpush1.bf16.msra.mxu0 0
  %617 = vmatprep.subr.bf16.mxu0 0
  %618 = vmatpush1.bf16.msra.mxu0 0
  %619 = vmatprep.subr.bf16.mxu0 0
  %620 = vmatpush1.bf16.msra.mxu0 0
  %621 = vmatprep.subr.bf16.mxu0 0
  %622 = vmatpush1.bf16.msra.mxu0 0
  %623 = vmatprep.mubr.bf16.mxu0 0
  %624 = vmatmul.mubr.bf16.gmra.mrb[0].mxu0 %v520
  %v625 = vpop.f32.mrb[0].mxu0
  %v626 = vadd.f32 0.0, %v625
  %v627 = vpop.f32.mrb[0].mxu0
  %v628 = vpop.f32.mrb[0].mxu0
  %v629 = vadd.f32 0.0, %v628
  %v630 = vpop.f32.mrb[0].mxu0
  %631 = vmatprep.mubr.bf16.mxu0 0
  %632 = vmatmul.mubr.bf16.gmra.mrb[0].mxu0 %v523
  %v633 = vpop.f32.mrb[0].mxu0
  %v634 = vadd.f32 0.0, %v633
  %v635 = vpop.f32.mrb[0].mxu0
  %v636 = vpop.f32.mrb[0].mxu0
  %v637 = vadd.f32 0.0, %v636
  %v638 = vpop.f32.mrb[0].mxu0
  %639 = vmatprep.mubr.bf16.mxu0 0
  %640 = vmatmul.mubr.bf16.gmra.mrb[0].mxu0 %v526
  %v641 = vpop.f32.mrb[0].mxu0
  %v642 = vadd.f32 0.0, %v641
  %v643 = vpop.f32.mrb[0].mxu0
  %v644 = vpop.f32.mrb[0].mxu0
  %v645 = vadd.f32 0.0, %v644
  %v646 = vpop.f32.mrb[0].mxu0
  %647 = vmatprep.mubr.bf16.mxu0 0
  %648 = vmatmul.mubr.bf16.gmra.mrb[0].mxu0 %v529
  %v649 = vpop.f32.mrb[0].mxu0
  %v650 = vadd.f32 0.0, %v649
  %v651 = vpop.f32.mrb[0].mxu0
  %v652 = vpop.f32.mrb[0].mxu0
  %v653 = vadd.f32 0.0, %v652
  %v654 = vpop.f32.mrb[0].mxu0
  %655 = vmatprep.mubr.bf16.mxu0 0
  %656 = vmatmul.mubr.bf16.gmra.mrb[0].mxu0 %v532
  %v657 = vpop.f32.mrb[0].mxu0
  %v658 = vadd.f32 0.0, %v657
  %v659 = vpop.f32.mrb[0].mxu0
  %v660 = vpop.f32.mrb[0].mxu0
  %v661 = vadd.f32 0.0, %v660
  %v662 = vpop.f32.mrb[0].mxu0
  %663 = vmatprep.mubr.bf16.mxu0 0
  %664 = vmatmul.mubr.bf16.gmra.mrb[0].mxu0 %v535
  %v665 = vpop.f32.mrb[0].mxu0
  %v666 = vadd.f32 0.0, %v665
  %v667 = vpop.f32.mrb[0].mxu0
  %v668 = vpop.f32.mrb[0].mxu0
  %v669 = vadd.f32 0.0, %v668
  %v670 = vpop.f32.mrb[0].mxu0
  %671 = vmatprep.mubr.bf16.mxu0 0
  %672 = vmatmul.mubr.bf16.gmra.mrb[0].mxu0 %v538
  %v673 = vpop.f32.mrb[0].mxu0
  %v674 = vadd.f32 0.0, %v673
  %v675 = vpop.f32.mrb[0].mxu0
  %v676 = vpop.f32.mrb[0].mxu0
  %v677 = vadd.f32 0.0, %v676
  %v678 = vpop.f32.mrb[0].mxu0
  %679 = vmatprep.mubr.bf16.mxu0 0
  %680 = vmatmul.mubr.bf16.gmra.mrb[0].mxu0 %v541
  %v681 = vpop.f32.mrb[0].mxu0
  %v682 = vadd.f32 0.0, %v681
  %v683 = vpop.f32.mrb[0].mxu0
  %v684 = vpop.f32.mrb[0].mxu0
  %v685 = vadd.f32 0.0, %v684
  %v686 = vpop.f32.mrb[0].mxu0
  %687 = vmatprep.mubr.bf16.mxu0 0
  %688 = vmatmul.mubr.bf16.gmra.mrb[0].mxu0 %v544
  %v689 = vpop.f32.mrb[0].mxu0
  %v690 = vadd.f32 0.0, %v689
  %v691 = vpop.f32.mrb[0].mxu0
  %v692 = vpop.f32.mrb[0].mxu0
  %v693 = vadd.f32 0.0, %v692
  %v694 = vpop.f32.mrb[0].mxu0
  %695 = vmatprep.mubr.bf16.mxu0 0
  %696 = vmatmul.mubr.bf16.gmra.mrb[0].mxu0 %v547
  %v697 = vpop.f32.mrb[0].mxu0
  %v698 = vadd.f32 0.0, %v697
  %v699 = vpop.f32.mrb[0].mxu0
  %v700 = vpop.f32.mrb[0].mxu0
  %v701 = vadd.f32 0.0, %v700
  %v702 = vpop.f32.mrb[0].mxu0
  %703 = vmatprep.mubr.bf16.mxu0 0
  %704 = vmatmul.mubr.bf16.gmra.mrb[0].mxu0 %v550
  %v705 = vpop.f32.mrb[0].mxu0
  %v706 = vadd.f32 0.0, %v705
  %v707 = vpop.f32.mrb[0].mxu0
  %v708 = vpop.f32.mrb[0].mxu0
  %v709 = vadd.f32 0.0, %v708
  %v710 = vpop.f32.mrb[0].mxu0
  %711 = vmatprep.mubr.bf16.mxu0 0
  %712 = vmatmul.mubr.bf16.gmra.mrb[0].mxu0 %v553
  %v713 = vpop.f32.mrb[0].mxu0
  %v714 = vadd.f32 0.0, %v713
  %v715 = vpop.f32.mrb[0].mxu0
  %v716 = vpop.f32.mrb[0].mxu0
  %v717 = vadd.f32 0.0, %v716
  %v718 = vpop.f32.mrb[0].mxu0
  %719 = vmatprep.mubr.bf16.mxu0 0
  %720 = vmatmul.mubr.bf16.gmra.mrb[0].mxu0 %v556
  %v721 = vpop.f32.mrb[0].mxu0
  %v722 = vadd.f32 0.0, %v721
  %v723 = vpop.f32.mrb[0].mxu0
  %v724 = vpop.f32.mrb[0].mxu0
  %v725 = vadd.f32 0.0, %v724
  %v726 = vpop.f32.mrb[0].mxu0
  %727 = vmatprep.mubr.bf16.mxu0 0
  %728 = vmatmul.mubr.bf16.gmra.mrb[0].mxu0 %v559
  %v729 = vpop.f32.mrb[0].mxu0
  %v730 = vadd.f32 0.0, %v729
  %v731 = vpop.f32.mrb[0].mxu0
  %v732 = vpop.f32.mrb[0].mxu0
  %v733 = vadd.f32 0.0, %v732
  %v734 = vpop.f32.mrb[0].mxu0
  %735 = vmatprep.mubr.bf16.mxu0 0
  %736 = vmatmul.mubr.bf16.gmra.mrb[0].mxu0 %v562
  %v737 = vpop.f32.mrb[0].mxu0
  %v738 = vadd.f32 0.0, %v737
  %v739 = vpop.f32.mrb[0].mxu0
  %v740 = vpop.f32.mrb[0].mxu0
  %v741 = vadd.f32 0.0, %v740
  %v742 = vpop.f32.mrb[0].mxu0
  %743 = vmatprep.mubr.bf16.mxu0 0
  %744 = vmatmul.mubr.bf16.gmra.mrb[0].mxu0 %v565
  %v745 = vpop.f32.mrb[0].mxu0
  %v746 = vadd.f32 0.0, %v745
  %v747 = vpop.f32.mrb[0].mxu0
  %v748 = vpop.f32.mrb[0].mxu0
  %v749 = vadd.f32 0.0, %v748
  %v750 = vpop.f32.mrb[0].mxu0
  %751 = vmatprep.mubr.bf16.mxu0 0
  %752 = vmatmul.mubr.bf16.gmra.mrb[0].mxu0 %v568
  %v753 = vpop.f32.mrb[0].mxu0
  %v754 = vadd.f32 0.0, %v753
  %v755 = vpop.f32.mrb[0].mxu0
  %v756 = vpop.f32.mrb[0].mxu0
  %v757 = vadd.f32 0.0, %v756
  %v758 = vpop.f32.mrb[0].mxu0
  %759 = vmatprep.mubr.bf16.mxu0 0
  %760 = vmatmul.mubr.bf16.gmra.mrb[0].mxu0 %v571
  %v761 = vpop.f32.mrb[0].mxu0
  %v762 = vadd.f32 0.0, %v761
  %v763 = vpop.f32.mrb[0].mxu0
  %v764 = vpop.f32.mrb[0].mxu0
  %v765 = vadd.f32 0.0, %v764
  %v766 = vpop.f32.mrb[0].mxu0
  %767 = vmatprep.mubr.bf16.mxu0 0
  %768 = vmatmul.mubr.bf16.gmra.mrb[0].mxu0 %v574
  %v769 = vpop.f32.mrb[0].mxu0
  %v770 = vadd.f32 0.0, %v769
  %v771 = vpop.f32.mrb[0].mxu0
  %v772 = vpop.f32.mrb[0].mxu0
  %v773 = vadd.f32 0.0, %v772
  %v774 = vpop.f32.mrb[0].mxu0
  %775 = vmatprep.mubr.bf16.mxu0 0
  %776 = vmatmul.mubr.bf16.gmra.mrb[0].mxu0 %v577
  %v777 = vpop.f32.mrb[0].mxu0
  %v778 = vadd.f32 0.0, %v777
  %v779 = vpop.f32.mrb[0].mxu0
  %v780 = vpop.f32.mrb[0].mxu0
  %v781 = vadd.f32 0.0, %v780
  %v782 = vpop.f32.mrb[0].mxu0
  %783 = vmatprep.mubr.bf16.mxu0 0
  %784 = vmatmul.mubr.bf16.gmra.mrb[0].mxu0 %v580
  %v785 = vpop.f32.mrb[0].mxu0
  %v786 = vadd.f32 0.0, %v785
  %v787 = vpop.f32.mrb[0].mxu0
  %v788 = vpop.f32.mrb[0].mxu0
  %v789 = vadd.f32 0.0, %v788
  %v790 = vpop.f32.mrb[0].mxu0
  %791 = vmatprep.mubr.bf16.mxu0 0
  %792 = vmatmul.mubr.bf16.gmra.mrb[0].mxu0 %v583
  %v793 = vpop.f32.mrb[0].mxu0
  %v794 = vadd.f32 0.0, %v793
  %v795 = vpop.f32.mrb[0].mxu0
  %v796 = vpop.f32.mrb[0].mxu0
  %v797 = vadd.f32 0.0, %v796
  %v798 = vpop.f32.mrb[0].mxu0
  %799 = vmatprep.mubr.bf16.mxu0 0
  %800 = vmatmul.mubr.bf16.gmra.mrb[0].mxu0 %v586
  %v801 = vpop.f32.mrb[0].mxu0
  %v802 = vadd.f32 0.0, %v801
  %v803 = vpop.f32.mrb[0].mxu0
  %v804 = vpop.f32.mrb[0].mxu0
  %v805 = vadd.f32 0.0, %v804
  %v806 = vpop.f32.mrb[0].mxu0
  %807 = vmatprep.mubr.bf16.mxu0 0
  %808 = vmatmul.mubr.bf16.gmra.mrb[0].mxu0 %v589
  %v809 = vpop.f32.mrb[0].mxu0
  %v810 = vadd.f32 0.0, %v809
  %v811 = vpop.f32.mrb[0].mxu0
  %v812 = vpop.f32.mrb[0].mxu0
  %v813 = vadd.f32 0.0, %v812
  %v814 = vpop.f32.mrb[0].mxu0
  %815 = vdwg.mxu0
  %v820 = vunpack.c.l.b16 %v280
  %v821 = vunpack.c.l.b16 %v281
  %v822 = vunpack.c.l.b16 %v282
  %v823 = vunpack.c.l.b16 %v283
  %v824 = vpack.c.b16 %v821, %v820
  %v825 = vpack.c.b16 %v823, %v822
  %v828 = vsel %vm518, %v258, 0
  %v830 = vsel %vm518, %v217, 0
  %v832 = vsel %vm518, %v219, 0
  %v834 = vsel %vm518, %v261, 0
  %v836 = vsel %vm518, %v222, 0
  %v838 = vsel %vm518, %v224, 0
  %v840 = vsel %vm518, %v264, 0
  %v842 = vsel %vm518, %v227, 0
  %v844 = vsel %vm518, %v229, 0
  %v846 = vsel %vm518, %v267, 0
  %v848 = vsel %vm518, %v232, 0
  %v850 = vsel %vm518, %v234, 0
  %v852 = vsel %vm518, %v270, 0
  %v854 = vsel %vm518, %v237, 0
  %v856 = vsel %vm518, %v239, 0
  %v858 = vsel %vm518, %v273, 0
  %v860 = vsel %vm518, %v242, 0
  %v862 = vsel %vm518, %v244, 0
  %v864 = vsel %vm518, %v276, 0
  %v866 = vsel %vm518, %v247, 0
  %v868 = vsel %vm518, %v249, 0
  %v870 = vsel %vm518, %v279, 0
  %v872 = vsel %vm518, %v252, 0
  %v874 = vsel %vm518, %v254, 0
  %876 = vmatprep.subr.bf16.mxu0 0
  %877 = vmatpush1.bf16.msra.mxu0 %v824
  %878 = vmatprep.subr.bf16.mxu0 0
  %879 = vmatpush1.bf16.msra.mxu0 %v825
  %880 = vmatprep.subr.bf16.mxu0 0
  %881 = vmatpush1.bf16.msra.mxu0 0
  %882 = vmatprep.subr.bf16.mxu0 0
  %883 = vmatpush1.bf16.msra.mxu0 0
  %884 = vmatprep.subr.bf16.mxu0 0
  %885 = vmatpush1.bf16.msra.mxu0 0
  %886 = vmatprep.subr.bf16.mxu0 0
  %887 = vmatpush1.bf16.msra.mxu0 0
  %888 = vmatprep.subr.bf16.mxu0 0
  %889 = vmatpush1.bf16.msra.mxu0 0
  %890 = vmatprep.subr.bf16.mxu0 0
  %891 = vmatpush1.bf16.msra.mxu0 0
  %892 = vmatprep.subr.bf16.mxu0 0
  %893 = vmatpush1.bf16.msra.mxu0 0
  %894 = vmatprep.subr.bf16.mxu0 0
  %895 = vmatpush1.bf16.msra.mxu0 0
  %896 = vmatprep.subr.bf16.mxu0 0
  %897 = vmatpush1.bf16.msra.mxu0 0
  %898 = vmatprep.subr.bf16.mxu0 0
  %899 = vmatpush1.bf16.msra.mxu0 0
  %900 = vmatprep.subr.bf16.mxu0 0
  %901 = vmatpush1.bf16.msra.mxu0 0
  %902 = vmatprep.subr.bf16.mxu0 0
  %903 = vmatpush1.bf16.msra.mxu0 0
  %904 = vmatprep.subr.bf16.mxu0 0
  %905 = vmatpush1.bf16.msra.mxu0 0
  %906 = vmatprep.subr.bf16.mxu0 0
  %907 = vmatpush1.bf16.msra.mxu0 0
  %908 = vmatprep.mubr.bf16.mxu0 0
  %909 = vmatmul.mubr.bf16.gmra.mrb[0].mxu0 %v828
  %v910 = vpop.f32.mrb[0].mxu0
  %v911 = vadd.f32 %v626, %v910
  %v912 = vpop.f32.mrb[0].mxu0
  %v913 = vpop.f32.mrb[0].mxu0
  %v914 = vadd.f32 %v629, %v913
  %v915 = vpop.f32.mrb[0].mxu0
  %916 = vmatprep.mubr.bf16.mxu0 0
  %917 = vmatmul.mubr.bf16.gmra.mrb[0].mxu0 %v830
  %v918 = vpop.f32.mrb[0].mxu0
  %v919 = vadd.f32 %v634, %v918
  %v920 = vpop.f32.mrb[0].mxu0
  %v921 = vpop.f32.mrb[0].mxu0
  %v922 = vadd.f32 %v637, %v921
  %v923 = vpop.f32.mrb[0].mxu0
  %924 = vmatprep.mubr.bf16.mxu0 0
  %925 = vmatmul.mubr.bf16.gmra.mrb[0].mxu0 %v832
  %v926 = vpop.f32.mrb[0].mxu0
  %v927 = vadd.f32 %v642, %v926
  %v928 = vpop.f32.mrb[0].mxu0
  %v929 = vpop.f32.mrb[0].mxu0
  %v930 = vadd.f32 %v645, %v929
  %v931 = vpop.f32.mrb[0].mxu0
  %932 = vmatprep.mubr.bf16.mxu0 0
  %933 = vmatmul.mubr.bf16.gmra.mrb[0].mxu0 %v834
  %v934 = vpop.f32.mrb[0].mxu0
  %v935 = vadd.f32 %v650, %v934
  %v936 = vpop.f32.mrb[0].mxu0
  %v937 = vpop.f32.mrb[0].mxu0
  %v938 = vadd.f32 %v653, %v937
  %v939 = vpop.f32.mrb[0].mxu0
  %940 = vmatprep.mubr.bf16.mxu0 0
  %941 = vmatmul.mubr.bf16.gmra.mrb[0].mxu0 %v836
  %v942 = vpop.f32.mrb[0].mxu0
  %v943 = vadd.f32 %v658, %v942
  %v944 = vpop.f32.mrb[0].mxu0
  %v945 = vpop.f32.mrb[0].mxu0
  %v946 = vadd.f32 %v661, %v945
  %v947 = vpop.f32.mrb[0].mxu0
  %948 = vmatprep.mubr.bf16.mxu0 0
  %949 = vmatmul.mubr.bf16.gmra.mrb[0].mxu0 %v838
  %v950 = vpop.f32.mrb[0].mxu0
  %v951 = vadd.f32 %v666, %v950
  %v952 = vpop.f32.mrb[0].mxu0
  %v953 = vpop.f32.mrb[0].mxu0
  %v954 = vadd.f32 %v669, %v953
  %v955 = vpop.f32.mrb[0].mxu0
  %956 = vmatprep.mubr.bf16.mxu0 0
  %957 = vmatmul.mubr.bf16.gmra.mrb[0].mxu0 %v840
  %v958 = vpop.f32.mrb[0].mxu0
  %v959 = vadd.f32 %v674, %v958
  %v960 = vpop.f32.mrb[0].mxu0
  %v961 = vpop.f32.mrb[0].mxu0
  %v962 = vadd.f32 %v677, %v961
  %v963 = vpop.f32.mrb[0].mxu0
  %964 = vmatprep.mubr.bf16.mxu0 0
  %965 = vmatmul.mubr.bf16.gmra.mrb[0].mxu0 %v842
  %v966 = vpop.f32.mrb[0].mxu0
  %v967 = vadd.f32 %v682, %v966
  %v968 = vpop.f32.mrb[0].mxu0
  %v969 = vpop.f32.mrb[0].mxu0
  %v970 = vadd.f32 %v685, %v969
  %v971 = vpop.f32.mrb[0].mxu0
  %972 = vmatprep.mubr.bf16.mxu0 0
  %973 = vmatmul.mubr.bf16.gmra.mrb[0].mxu0 %v844
  %v974 = vpop.f32.mrb[0].mxu0
  %v975 = vadd.f32 %v690, %v974
  %v976 = vpop.f32.mrb[0].mxu0
  %v977 = vpop.f32.mrb[0].mxu0
  %v978 = vadd.f32 %v693, %v977
  %v979 = vpop.f32.mrb[0].mxu0
  %980 = vmatprep.mubr.bf16.mxu0 0
  %981 = vmatmul.mubr.bf16.gmra.mrb[0].mxu0 %v846
  %v982 = vpop.f32.mrb[0].mxu0
  %v983 = vadd.f32 %v698, %v982
  %v984 = vpop.f32.mrb[0].mxu0
  %v985 = vpop.f32.mrb[0].mxu0
  %v986 = vadd.f32 %v701, %v985
  %v987 = vpop.f32.mrb[0].mxu0
  %988 = vmatprep.mubr.bf16.mxu0 0
  %989 = vmatmul.mubr.bf16.gmra.mrb[0].mxu0 %v848
  %v990 = vpop.f32.mrb[0].mxu0
  %v991 = vadd.f32 %v706, %v990
  %v992 = vpop.f32.mrb[0].mxu0
  %v993 = vpop.f32.mrb[0].mxu0
  %v994 = vadd.f32 %v709, %v993
  %v995 = vpop.f32.mrb[0].mxu0
  %996 = vmatprep.mubr.bf16.mxu0 0
  %997 = vmatmul.mubr.bf16.gmra.mrb[0].mxu0 %v850
  %v998 = vpop.f32.mrb[0].mxu0
  %v999 = vadd.f32 %v714, %v998
  %v1000 = vpop.f32.mrb[0].mxu0
  %v1001 = vpop.f32.mrb[0].mxu0
  %v1002 = vadd.f32 %v717, %v1001
  %v1003 = vpop.f32.mrb[0].mxu0
  %1004 = vmatprep.mubr.bf16.mxu0 0
  %1005 = vmatmul.mubr.bf16.gmra.mrb[0].mxu0 %v852
  %v1006 = vpop.f32.mrb[0].mxu0
  %v1007 = vadd.f32 %v722, %v1006
  %v1008 = vpop.f32.mrb[0].mxu0
  %v1009 = vpop.f32.mrb[0].mxu0
  %v1010 = vadd.f32 %v725, %v1009
  %v1011 = vpop.f32.mrb[0].mxu0
  %1012 = vmatprep.mubr.bf16.mxu0 0
  %1013 = vmatmul.mubr.bf16.gmra.mrb[0].mxu0 %v854
  %v1014 = vpop.f32.mrb[0].mxu0
  %v1015 = vadd.f32 %v730, %v1014
  %v1016 = vpop.f32.mrb[0].mxu0
  %v1017 = vpop.f32.mrb[0].mxu0
  %v1018 = vadd.f32 %v733, %v1017
  %v1019 = vpop.f32.mrb[0].mxu0
  %1020 = vmatprep.mubr.bf16.mxu0 0
  %1021 = vmatmul.mubr.bf16.gmra.mrb[0].mxu0 %v856
  %v1022 = vpop.f32.mrb[0].mxu0
  %v1023 = vadd.f32 %v738, %v1022
  %v1024 = vpop.f32.mrb[0].mxu0
  %v1025 = vpop.f32.mrb[0].mxu0
  %v1026 = vadd.f32 %v741, %v1025
  %v1027 = vpop.f32.mrb[0].mxu0
  %1028 = vmatprep.mubr.bf16.mxu0 0
  %1029 = vmatmul.mubr.bf16.gmra.mrb[0].mxu0 %v858
  %v1030 = vpop.f32.mrb[0].mxu0
  %v1031 = vadd.f32 %v746, %v1030
  %v1032 = vpop.f32.mrb[0].mxu0
  %v1033 = vpop.f32.mrb[0].mxu0
  %v1034 = vadd.f32 %v749, %v1033
  %v1035 = vpop.f32.mrb[0].mxu0
  %1036 = vmatprep.mubr.bf16.mxu0 0
  %1037 = vmatmul.mubr.bf16.gmra.mrb[0].mxu0 %v860
  %v1038 = vpop.f32.mrb[0].mxu0
  %v1039 = vadd.f32 %v754, %v1038
  %v1040 = vpop.f32.mrb[0].mxu0
  %v1041 = vpop.f32.mrb[0].mxu0
  %v1042 = vadd.f32 %v757, %v1041
  %v1043 = vpop.f32.mrb[0].mxu0
  %1044 = vmatprep.mubr.bf16.mxu0 0
  %1045 = vmatmul.mubr.bf16.gmra.mrb[0].mxu0 %v862
  %v1046 = vpop.f32.mrb[0].mxu0
  %v1047 = vadd.f32 %v762, %v1046
  %v1048 = vpop.f32.mrb[0].mxu0
  %v1049 = vpop.f32.mrb[0].mxu0
  %v1050 = vadd.f32 %v765, %v1049
  %v1051 = vpop.f32.mrb[0].mxu0
  %1052 = vmatprep.mubr.bf16.mxu0 0
  %1053 = vmatmul.mubr.bf16.gmra.mrb[0].mxu0 %v864
  %v1054 = vpop.f32.mrb[0].mxu0
  %v1055 = vadd.f32 %v770, %v1054
  %v1056 = vpop.f32.mrb[0].mxu0
  %v1057 = vpop.f32.mrb[0].mxu0
  %v1058 = vadd.f32 %v773, %v1057
  %v1059 = vpop.f32.mrb[0].mxu0
  %1060 = vmatprep.mubr.bf16.mxu0 0
  %1061 = vmatmul.mubr.bf16.gmra.mrb[0].mxu0 %v866
  %v1062 = vpop.f32.mrb[0].mxu0
  %v1063 = vadd.f32 %v778, %v1062
  %v1064 = vpop.f32.mrb[0].mxu0
  %v1065 = vpop.f32.mrb[0].mxu0
  %v1066 = vadd.f32 %v781, %v1065
  %v1067 = vpop.f32.mrb[0].mxu0
  %1068 = vmatprep.mubr.bf16.mxu0 0
  %1069 = vmatmul.mubr.bf16.gmra.mrb[0].mxu0 %v868
  %v1070 = vpop.f32.mrb[0].mxu0
  %v1071 = vadd.f32 %v786, %v1070
  %v1072 = vpop.f32.mrb[0].mxu0
  %v1073 = vpop.f32.mrb[0].mxu0
  %v1074 = vadd.f32 %v789, %v1073
  %v1075 = vpop.f32.mrb[0].mxu0
  %1076 = vmatprep.mubr.bf16.mxu0 0
  %1077 = vmatmul.mubr.bf16.gmra.mrb[0].mxu0 %v870
  %v1078 = vpop.f32.mrb[0].mxu0
  %v1079 = vadd.f32 %v794, %v1078
  %v1080 = vpop.f32.mrb[0].mxu0
  %v1081 = vpop.f32.mrb[0].mxu0
  %v1082 = vadd.f32 %v797, %v1081
  %v1083 = vpop.f32.mrb[0].mxu0
  %1084 = vmatprep.mubr.bf16.mxu0 0
  %1085 = vmatmul.mubr.bf16.gmra.mrb[0].mxu0 %v872
  %v1086 = vpop.f32.mrb[0].mxu0
  %v1087 = vadd.f32 %v802, %v1086
  %v1088 = vpop.f32.mrb[0].mxu0
  %v1089 = vpop.f32.mrb[0].mxu0
  %v1090 = vadd.f32 %v805, %v1089
  %v1091 = vpop.f32.mrb[0].mxu0
  %1092 = vmatprep.mubr.bf16.mxu0 0
  %1093 = vmatmul.mubr.bf16.gmra.mrb[0].mxu0 %v874
  %v1094 = vpop.f32.mrb[0].mxu0
  %v1095 = vadd.f32 %v810, %v1094
  %v1096 = vpop.f32.mrb[0].mxu0
  %v1097 = vpop.f32.mrb[0].mxu0
  %v1098 = vadd.f32 %v813, %v1097
  %v1099 = vpop.f32.mrb[0].mxu0
  %1100 = vdwg.mxu0
  %vm1109 = vcmask 1046528
  %v1110 = vrot.slane %v258, 1
  %v1111 = vrot.slane %v217, 1
  %v1112 = vsel %vm1109, %v1110, %v1111
  %v1113 = vrot.slane %v219, 1
  %v1114 = vsel %vm1109, %v1111, %v1113
  %v1115 = vrot.slane %v218, 1
  %v1116 = vsel %vm1109, %v1113, %v1115
  %v1117 = vrot.slane %v261, 1
  %v1118 = vrot.slane %v222, 1
  %v1119 = vsel %vm1109, %v1117, %v1118
  %v1120 = vrot.slane %v224, 1
  %v1121 = vsel %vm1109, %v1118, %v1120
  %v1122 = vrot.slane %v223, 1
  %v1123 = vsel %vm1109, %v1120, %v1122
  %v1124 = vrot.slane %v264, 1
  %v1125 = vrot.slane %v227, 1
  %v1126 = vsel %vm1109, %v1124, %v1125
  %v1127 = vrot.slane %v229, 1
  %v1128 = vsel %vm1109, %v1125, %v1127
  %v1129 = vrot.slane %v228, 1
  %v1130 = vsel %vm1109, %v1127, %v1129
  %v1131 = vrot.slane %v267, 1
  %v1132 = vrot.slane %v232, 1
  %v1133 = vsel %vm1109, %v1131, %v1132
  %v1134 = vrot.slane %v234, 1
  %v1135 = vsel %vm1109, %v1132, %v1134
  %v1136 = vrot.slane %v233, 1
  %v1137 = vsel %vm1109, %v1134, %v1136
  %v1138 = vrot.slane %v270, 1
  %v1139 = vrot.slane %v237, 1
  %v1140 = vsel %vm1109, %v1138, %v1139
  %v1141 = vrot.slane %v239, 1
  %v1142 = vsel %vm1109, %v1139, %v1141
  %v1143 = vrot.slane %v238, 1
  %v1144 = vsel %vm1109, %v1141, %v1143
  %v1145 = vrot.slane %v273, 1
  %v1146 = vrot.slane %v242, 1
  %v1147 = vsel %vm1109, %v1145, %v1146
  %v1148 = vrot.slane %v244, 1
  %v1149 = vsel %vm1109, %v1146, %v1148
  %v1150 = vrot.slane %v243, 1
  %v1151 = vsel %vm1109, %v1148, %v1150
  %v1152 = vrot.slane %v276, 1
  %v1153 = vrot.slane %v247, 1
  %v1154 = vsel %vm1109, %v1152, %v1153
  %v1155 = vrot.slane %v249, 1
  %v1156 = vsel %vm1109, %v1153, %v1155
  %v1157 = vrot.slane %v248, 1
  %v1158 = vsel %vm1109, %v1155, %v1157
  %v1159 = vrot.slane %v279, 1
  %v1160 = vrot.slane %v252, 1
  %v1161 = vsel %vm1109, %v1159, %v1160
  %v1162 = vrot.slane %v254, 1
  %v1163 = vsel %vm1109, %v1160, %v1162
  %v1164 = vrot.slane %v253, 1
  %v1165 = vsel %vm1109, %v1162, %v1164
  %s1166 = scalar_lea.vmem %s1, 32
  %v1167 = vld [vmem:[%s1166] sm:$0xf]
  %v1168 = vld [vmem:[%s1166 + $0x4] sm:$0xf]
  %v1169 = vld [vmem:[%s1166 + $0x8] sm:$0xf]
  %v1170 = vld [vmem:[%s1166 + $0xc] sm:$0xf]
  %v1175 = vunpack.c.l.b16 %v1167
  %v1176 = vunpack.c.l.b16 %v1168
  %v1177 = vunpack.c.l.b16 %v1169
  %v1178 = vunpack.c.l.b16 %v1170
  %v1179 = vpack.c.b16 %v1176, %v1175
  %v1180 = vpack.c.b16 %v1178, %v1177
  %v1184 = vsel %vm518, %v1112, 0
  %v1187 = vsel %vm518, %v1114, 0
  %v1190 = vsel %vm518, %v1116, 0
  %v1193 = vsel %vm518, %v1119, 0
  %v1196 = vsel %vm518, %v1121, 0
  %v1199 = vsel %vm518, %v1123, 0
  %v1202 = vsel %vm518, %v1126, 0
  %v1205 = vsel %vm518, %v1128, 0
  %v1208 = vsel %vm518, %v1130, 0
  %v1211 = vsel %vm518, %v1133, 0
  %v1214 = vsel %vm518, %v1135, 0
  %v1217 = vsel %vm518, %v1137, 0
  %v1220 = vsel %vm518, %v1140, 0
  %v1223 = vsel %vm518, %v1142, 0
  %v1226 = vsel %vm518, %v1144, 0
  %v1229 = vsel %vm518, %v1147, 0
  %v1232 = vsel %vm518, %v1149, 0
  %v1235 = vsel %vm518, %v1151, 0
  %v1238 = vsel %vm518, %v1154, 0
  %v1241 = vsel %vm518, %v1156, 0
  %v1244 = vsel %vm518, %v1158, 0
  %v1247 = vsel %vm518, %v1161, 0
  %v1250 = vsel %vm518, %v1163, 0
  %v1253 = vsel %vm518, %v1165, 0
  %1255 = vmatprep.subr.bf16.mxu0 0
  %1256 = vmatpush1.bf16.msra.mxu0 %v1179
  %1257 = vmatprep.subr.bf16.mxu0 0
  %1258 = vmatpush1.bf16.msra.mxu0 %v1180
  %1259 = vmatprep.subr.bf16.mxu0 0
  %1260 = vmatpush1.bf16.msra.mxu0 0
  %1261 = vmatprep.subr.bf16.mxu0 0
  %1262 = vmatpush1.bf16.msra.mxu0 0
  %1263 = vmatprep.subr.bf16.mxu0 0
  %1264 = vmatpush1.bf16.msra.mxu0 0
  %1265 = vmatprep.subr.bf16.mxu0 0
  %1266 = vmatpush1.bf16.msra.mxu0 0
  %1267 = vmatprep.subr.bf16.mxu0 0
  %1268 = vmatpush1.bf16.msra.mxu0 0
  %1269 = vmatprep.subr.bf16.mxu0 0
  %1270 = vmatpush1.bf16.msra.mxu0 0
  %1271 = vmatprep.subr.bf16.mxu0 0
  %1272 = vmatpush1.bf16.msra.mxu0 0
  %1273 = vmatprep.subr.bf16.mxu0 0
  %1274 = vmatpush1.bf16.msra.mxu0 0
  %1275 = vmatprep.subr.bf16.mxu0 0
  %1276 = vmatpush1.bf16.msra.mxu0 0
  %1277 = vmatprep.subr.bf16.mxu0 0
  %1278 = vmatpush1.bf16.msra.mxu0 0
  %1279 = vmatprep.subr.bf16.mxu0 0
  %1280 = vmatpush1.bf16.msra.mxu0 0
  %1281 = vmatprep.subr.bf16.mxu0 0
  %1282 = vmatpush1.bf16.msra.mxu0 0
  %1283 = vmatprep.subr.bf16.mxu0 0
  %1284 = vmatpush1.bf16.msra.mxu0 0
  %1285 = vmatprep.subr.bf16.mxu0 0
  %1286 = vmatpush1.bf16.msra.mxu0 0
  %1287 = vmatprep.mubr.bf16.mxu0 0
  %1288 = vmatmul.mubr.bf16.gmra.mrb[0].mxu0 %v1184
  %v1289 = vpop.f32.mrb[0].mxu0
  %v1290 = vadd.f32 0.0, %v1289
  %v1291 = vpop.f32.mrb[0].mxu0
  %v1292 = vpop.f32.mrb[0].mxu0
  %v1293 = vadd.f32 0.0, %v1292
  %v1294 = vpop.f32.mrb[0].mxu0
  %1295 = vmatprep.mubr.bf16.mxu0 0
  %1296 = vmatmul.mubr.bf16.gmra.mrb[0].mxu0 %v1187
  %v1297 = vpop.f32.mrb[0].mxu0
  %v1298 = vadd.f32 0.0, %v1297
  %v1299 = vpop.f32.mrb[0].mxu0
  %v1300 = vpop.f32.mrb[0].mxu0
  %v1301 = vadd.f32 0.0, %v1300
  %v1302 = vpop.f32.mrb[0].mxu0
  %1303 = vmatprep.mubr.bf16.mxu0 0
  %1304 = vmatmul.mubr.bf16.gmra.mrb[0].mxu0 %v1190
  %v1305 = vpop.f32.mrb[0].mxu0
  %v1306 = vadd.f32 0.0, %v1305
  %v1307 = vpop.f32.mrb[0].mxu0
  %v1308 = vpop.f32.mrb[0].mxu0
  %v1309 = vadd.f32 0.0, %v1308
  %v1310 = vpop.f32.mrb[0].mxu0
  %1311 = vmatprep.mubr.bf16.mxu0 0
  %1312 = vmatmul.mubr.bf16.gmra.mrb[0].mxu0 %v1193
  %v1313 = vpop.f32.mrb[0].mxu0
  %v1314 = vadd.f32 0.0, %v1313
  %v1315 = vpop.f32.mrb[0].mxu0
  %v1316 = vpop.f32.mrb[0].mxu0
  %v1317 = vadd.f32 0.0, %v1316
  %v1318 = vpop.f32.mrb[0].mxu0
  %1319 = vmatprep.mubr.bf16.mxu0 0
  %1320 = vmatmul.mubr.bf16.gmra.mrb[0].mxu0 %v1196
  %v1321 = vpop.f32.mrb[0].mxu0
  %v1322 = vadd.f32 0.0, %v1321
  %v1323 = vpop.f32.mrb[0].mxu0
  %v1324 = vpop.f32.mrb[0].mxu0
  %v1325 = vadd.f32 0.0, %v1324
  %v1326 = vpop.f32.mrb[0].mxu0
  %1327 = vmatprep.mubr.bf16.mxu0 0
  %1328 = vmatmul.mubr.bf16.gmra.mrb[0].mxu0 %v1199
  %v1329 = vpop.f32.mrb[0].mxu0
  %v1330 = vadd.f32 0.0, %v1329
  %v1331 = vpop.f32.mrb[0].mxu0
  %v1332 = vpop.f32.mrb[0].mxu0
  %v1333 = vadd.f32 0.0, %v1332
  %v1334 = vpop.f32.mrb[0].mxu0
  %1335 = vmatprep.mubr.bf16.mxu0 0
  %1336 = vmatmul.mubr.bf16.gmra.mrb[0].mxu0 %v1202
  %v1337 = vpop.f32.mrb[0].mxu0
  %v1338 = vadd.f32 0.0, %v1337
  %v1339 = vpop.f32.mrb[0].mxu0
  %v1340 = vpop.f32.mrb[0].mxu0
  %v1341 = vadd.f32 0.0, %v1340
  %v1342 = vpop.f32.mrb[0].mxu0
  %1343 = vmatprep.mubr.bf16.mxu0 0
  %1344 = vmatmul.mubr.bf16.gmra.mrb[0].mxu0 %v1205
  %v1345 = vpop.f32.mrb[0].mxu0
  %v1346 = vadd.f32 0.0, %v1345
  %v1347 = vpop.f32.mrb[0].mxu0
  %v1348 = vpop.f32.mrb[0].mxu0
  %v1349 = vadd.f32 0.0, %v1348
  %v1350 = vpop.f32.mrb[0].mxu0
  %1351 = vmatprep.mubr.bf16.mxu0 0
  %1352 = vmatmul.mubr.bf16.gmra.mrb[0].mxu0 %v1208
  %v1353 = vpop.f32.mrb[0].mxu0
  %v1354 = vadd.f32 0.0, %v1353
  %v1355 = vpop.f32.mrb[0].mxu0
  %v1356 = vpop.f32.mrb[0].mxu0
  %v1357 = vadd.f32 0.0, %v1356
  %v1358 = vpop.f32.mrb[0].mxu0
  %1359 = vmatprep.mubr.bf16.mxu0 0
  %1360 = vmatmul.mubr.bf16.gmra.mrb[0].mxu0 %v1211
  %v1361 = vpop.f32.mrb[0].mxu0
  %v1362 = vadd.f32 0.0, %v1361
  %v1363 = vpop.f32.mrb[0].mxu0
  %v1364 = vpop.f32.mrb[0].mxu0
  %v1365 = vadd.f32 0.0, %v1364
  %v1366 = vpop.f32.mrb[0].mxu0
  %1367 = vmatprep.mubr.bf16.mxu0 0
  %1368 = vmatmul.mubr.bf16.gmra.mrb[0].mxu0 %v1214
  %v1369 = vpop.f32.mrb[0].mxu0
  %v1370 = vadd.f32 0.0, %v1369
  %v1371 = vpop.f32.mrb[0].mxu0
  %v1372 = vpop.f32.mrb[0].mxu0
  %v1373 = vadd.f32 0.0, %v1372
  %v1374 = vpop.f32.mrb[0].mxu0
  %1375 = vmatprep.mubr.bf16.mxu0 0
  %1376 = vmatmul.mubr.bf16.gmra.mrb[0].mxu0 %v1217
  %v1377 = vpop.f32.mrb[0].mxu0
  %v1378 = vadd.f32 0.0, %v1377
  %v1379 = vpop.f32.mrb[0].mxu0
  %v1380 = vpop.f32.mrb[0].mxu0
  %v1381 = vadd.f32 0.0, %v1380
  %v1382 = vpop.f32.mrb[0].mxu0
  %1383 = vmatprep.mubr.bf16.mxu0 0
  %1384 = vmatmul.mubr.bf16.gmra.mrb[0].mxu0 %v1220
  %v1385 = vpop.f32.mrb[0].mxu0
  %v1386 = vadd.f32 0.0, %v1385
  %v1387 = vpop.f32.mrb[0].mxu0
  %v1388 = vpop.f32.mrb[0].mxu0
  %v1389 = vadd.f32 0.0, %v1388
  %v1390 = vpop.f32.mrb[0].mxu0
  %1391 = vmatprep.mubr.bf16.mxu0 0
  %1392 = vmatmul.mubr.bf16.gmra.mrb[0].mxu0 %v1223
  %v1393 = vpop.f32.mrb[0].mxu0
  %v1394 = vadd.f32 0.0, %v1393
  %v1395 = vpop.f32.mrb[0].mxu0
  %v1396 = vpop.f32.mrb[0].mxu0
  %v1397 = vadd.f32 0.0, %v1396
  %v1398 = vpop.f32.mrb[0].mxu0
  %1399 = vmatprep.mubr.bf16.mxu0 0
  %1400 = vmatmul.mubr.bf16.gmra.mrb[0].mxu0 %v1226
  %v1401 = vpop.f32.mrb[0].mxu0
  %v1402 = vadd.f32 0.0, %v1401
  %v1403 = vpop.f32.mrb[0].mxu0
  %v1404 = vpop.f32.mrb[0].mxu0
  %v1405 = vadd.f32 0.0, %v1404
  %v1406 = vpop.f32.mrb[0].mxu0
  %1407 = vmatprep.mubr.bf16.mxu0 0
  %1408 = vmatmul.mubr.bf16.gmra.mrb[0].mxu0 %v1229
  %v1409 = vpop.f32.mrb[0].mxu0
  %v1410 = vadd.f32 0.0, %v1409
  %v1411 = vpop.f32.mrb[0].mxu0
  %v1412 = vpop.f32.mrb[0].mxu0
  %v1413 = vadd.f32 0.0, %v1412
  %v1414 = vpop.f32.mrb[0].mxu0
  %1415 = vmatprep.mubr.bf16.mxu0 0
  %1416 = vmatmul.mubr.bf16.gmra.mrb[0].mxu0 %v1232
  %v1417 = vpop.f32.mrb[0].mxu0
  %v1418 = vadd.f32 0.0, %v1417
  %v1419 = vpop.f32.mrb[0].mxu0
  %v1420 = vpop.f32.mrb[0].mxu0
  %v1421 = vadd.f32 0.0, %v1420
  %v1422 = vpop.f32.mrb[0].mxu0
  %1423 = vmatprep.mubr.bf16.mxu0 0
  %1424 = vmatmul.mubr.bf16.gmra.mrb[0].mxu0 %v1235
  %v1425 = vpop.f32.mrb[0].mxu0
  %v1426 = vadd.f32 0.0, %v1425
  %v1427 = vpop.f32.mrb[0].mxu0
  %v1428 = vpop.f32.mrb[0].mxu0
  %v1429 = vadd.f32 0.0, %v1428
  %v1430 = vpop.f32.mrb[0].mxu0
  %1431 = vmatprep.mubr.bf16.mxu0 0
  %1432 = vmatmul.mubr.bf16.gmra.mrb[0].mxu0 %v1238
  %v1433 = vpop.f32.mrb[0].mxu0
  %v1434 = vadd.f32 0.0, %v1433
  %v1435 = vpop.f32.mrb[0].mxu0
  %v1436 = vpop.f32.mrb[0].mxu0
  %v1437 = vadd.f32 0.0, %v1436
  %v1438 = vpop.f32.mrb[0].mxu0
  %1439 = vmatprep.mubr.bf16.mxu0 0
  %1440 = vmatmul.mubr.bf16.gmra.mrb[0].mxu0 %v1241
  %v1441 = vpop.f32.mrb[0].mxu0
  %v1442 = vadd.f32 0.0, %v1441
  %v1443 = vpop.f32.mrb[0].mxu0
  %v1444 = vpop.f32.mrb[0].mxu0
  %v1445 = vadd.f32 0.0, %v1444
  %v1446 = vpop.f32.mrb[0].mxu0
  %1447 = vmatprep.mubr.bf16.mxu0 0
  %1448 = vmatmul.mubr.bf16.gmra.mrb[0].mxu0 %v1244
  %v1449 = vpop.f32.mrb[0].mxu0
  %v1450 = vadd.f32 0.0, %v1449
  %v1451 = vpop.f32.mrb[0].mxu0
  %v1452 = vpop.f32.mrb[0].mxu0
  %v1453 = vadd.f32 0.0, %v1452
  %v1454 = vpop.f32.mrb[0].mxu0
  %1455 = vmatprep.mubr.bf16.mxu0 0
  %1456 = vmatmul.mubr.bf16.gmra.mrb[0].mxu0 %v1247
  %v1457 = vpop.f32.mrb[0].mxu0
  %v1458 = vadd.f32 0.0, %v1457
  %v1459 = vpop.f32.mrb[0].mxu0
  %v1460 = vpop.f32.mrb[0].mxu0
  %v1461 = vadd.f32 0.0, %v1460
  %v1462 = vpop.f32.mrb[0].mxu0
  %1463 = vmatprep.mubr.bf16.mxu0 0
  %1464 = vmatmul.mubr.bf16.gmra.mrb[0].mxu0 %v1250
  %v1465 = vpop.f32.mrb[0].mxu0
  %v1466 = vadd.f32 0.0, %v1465
  %v1467 = vpop.f32.mrb[0].mxu0
  %v1468 = vpop.f32.mrb[0].mxu0
  %v1469 = vadd.f32 0.0, %v1468
  %v1470 = vpop.f32.mrb[0].mxu0
  %1471 = vmatprep.mubr.bf16.mxu0 0
  %1472 = vmatmul.mubr.bf16.gmra.mrb[0].mxu0 %v1253
  %v1473 = vpop.f32.mrb[0].mxu0
  %v1474 = vadd.f32 0.0, %v1473
  %v1475 = vpop.f32.mrb[0].mxu0
  %v1476 = vpop.f32.mrb[0].mxu0
  %v1477 = vadd.f32 0.0, %v1476
  %v1478 = vpop.f32.mrb[0].mxu0
  %1479 = vdwg.mxu0
  %v1480 = vadd.f32 %v911, %v1290
  %v1481 = vadd.f32 %v914, %v1293
  %v1482 = vadd.f32 %v919, %v1298
  %v1483 = vadd.f32 %v922, %v1301
  %v1484 = vadd.f32 %v927, %v1306
  %v1485 = vadd.f32 %v930, %v1309
  %v1486 = vadd.f32 %v935, %v1314
  %v1487 = vadd.f32 %v938, %v1317
  %v1488 = vadd.f32 %v943, %v1322
  %v1489 = vadd.f32 %v946, %v1325
  %v1490 = vadd.f32 %v951, %v1330
  %v1491 = vadd.f32 %v954, %v1333
  %v1492 = vadd.f32 %v959, %v1338
  %v1493 = vadd.f32 %v962, %v1341
  %v1494 = vadd.f32 %v967, %v1346
  %v1495 = vadd.f32 %v970, %v1349
  %v1496 = vadd.f32 %v975, %v1354
  %v1497 = vadd.f32 %v978, %v1357
  %v1498 = vadd.f32 %v983, %v1362
  %v1499 = vadd.f32 %v986, %v1365
  %v1500 = vadd.f32 %v991, %v1370
  %v1501 = vadd.f32 %v994, %v1373
  %v1502 = vadd.f32 %v999, %v1378
  %v1503 = vadd.f32 %v1002, %v1381
  %v1504 = vadd.f32 %v1007, %v1386
  %v1505 = vadd.f32 %v1010, %v1389
  %v1506 = vadd.f32 %v1015, %v1394
  %v1507 = vadd.f32 %v1018, %v1397
  %v1508 = vadd.f32 %v1023, %v1402
  %v1509 = vadd.f32 %v1026, %v1405
  %v1510 = vadd.f32 %v1031, %v1410
  %v1511 = vadd.f32 %v1034, %v1413
  %v1512 = vadd.f32 %v1039, %v1418
  %v1513 = vadd.f32 %v1042, %v1421
  %v1514 = vadd.f32 %v1047, %v1426
  %v1515 = vadd.f32 %v1050, %v1429
  %v1516 = vadd.f32 %v1055, %v1434
  %v1517 = vadd.f32 %v1058, %v1437
  %v1518 = vadd.f32 %v1063, %v1442
  %v1519 = vadd.f32 %v1066, %v1445
  %v1520 = vadd.f32 %v1071, %v1450
  %v1521 = vadd.f32 %v1074, %v1453
  %v1522 = vadd.f32 %v1079, %v1458
  %v1523 = vadd.f32 %v1082, %v1461
  %v1524 = vadd.f32 %v1087, %v1466
  %v1525 = vadd.f32 %v1090, %v1469
  %v1526 = vadd.f32 %v1095, %v1474
  %v1527 = vadd.f32 %v1098, %v1477
  %v1529 = vunpack.c.l.s4 1966171168
  %v1530 = vunpack.c.0.s8 %v1529
  %v1531 = vlaneseq
  %v1532 = vshrl.u32 %v1531, 7
  %v1533 = vsub.s32 %v1530, %v1532
  %v1534 = vrot.slane %v43, %v1533
  %v1535 = vcombine.high %v1534, %v1534
  %v1537 = vunpack.c.l.s4 1966171168
  %v1538 = vunpack.c.0.s8 %v1537
  %v1539 = vlaneseq
  %v1540 = vshrl.u32 %v1539, 7
  %v1541 = vsub.s32 %v1538, %v1540
  %v1542 = vrot.slane %v1535, %v1541
  %v1543 = vcombine.high %v1542, %v1542
  %v1545 = vunpack.c.l.s4 1966171168
  %v1546 = vunpack.c.0.s8 %v1545
  %v1547 = vlaneseq
  %v1548 = vshrl.u32 %v1547, 7
  %v1549 = vsub.s32 %v1546, %v1548
  %v1550 = vrot.slane %v49, %v1549
  %v1551 = vcombine.high %v1550, %v1550
  %v1553 = vunpack.c.l.s4 1966171168
  %v1554 = vunpack.c.0.s8 %v1553
  %v1555 = vlaneseq
  %v1556 = vshrl.u32 %v1555, 7
  %v1557 = vsub.s32 %v1554, %v1556
  %v1558 = vrot.slane %v1551, %v1557
  %v1559 = vcombine.high %v1558, %v1558
  %v1561 = vunpack.c.l.s4 1966171168
  %v1562 = vunpack.c.0.s8 %v1561
  %v1563 = vlaneseq
  %v1564 = vshrl.u32 %v1563, 7
  %v1565 = vsub.s32 %v1562, %v1564
  %v1566 = vrot.slane %v55, %v1565
  %v1567 = vcombine.high %v1566, %v1566
  %v1569 = vunpack.c.l.s4 1966171168
  %v1570 = vunpack.c.0.s8 %v1569
  %v1571 = vlaneseq
  %v1572 = vshrl.u32 %v1571, 7
  %v1573 = vsub.s32 %v1570, %v1572
  %v1574 = vrot.slane %v1567, %v1573
  %v1575 = vcombine.high %v1574, %v1574
  %v1577 = vunpack.c.l.s4 1966171168
  %v1578 = vunpack.c.0.s8 %v1577
  %v1579 = vlaneseq
  %v1580 = vshrl.u32 %v1579, 7
  %v1581 = vsub.s32 %v1578, %v1580
  %v1582 = vrot.slane %v61, %v1581
  %v1583 = vcombine.high %v1582, %v1582
  %v1585 = vunpack.c.l.s4 1966171168
  %v1586 = vunpack.c.0.s8 %v1585
  %v1587 = vlaneseq
  %v1588 = vshrl.u32 %v1587, 7
  %v1589 = vsub.s32 %v1586, %v1588
  %v1590 = vrot.slane %v1583, %v1589
  %v1591 = vcombine.high %v1590, %v1590
  %v1593 = vunpack.c.l.s4 1966171168
  %v1594 = vunpack.c.0.s8 %v1593
  %v1595 = vlaneseq
  %v1596 = vshrl.u32 %v1595, 7
  %v1597 = vsub.s32 %v1594, %v1596
  %v1598 = vrot.slane %v67, %v1597
  %v1599 = vcombine.high %v1598, %v1598
  %v1601 = vunpack.c.l.s4 1966171168
  %v1602 = vunpack.c.0.s8 %v1601
  %v1603 = vlaneseq
  %v1604 = vshrl.u32 %v1603, 7
  %v1605 = vsub.s32 %v1602, %v1604
  %v1606 = vrot.slane %v1599, %v1605
  %v1607 = vcombine.high %v1606, %v1606
  %v1609 = vunpack.c.l.s4 1966171168
  %v1610 = vunpack.c.0.s8 %v1609
  %v1611 = vlaneseq
  %v1612 = vshrl.u32 %v1611, 7
  %v1613 = vsub.s32 %v1610, %v1612
  %v1614 = vrot.slane %v73, %v1613
  %v1615 = vcombine.high %v1614, %v1614
  %v1617 = vunpack.c.l.s4 1966171168
  %v1618 = vunpack.c.0.s8 %v1617
  %v1619 = vlaneseq
  %v1620 = vshrl.u32 %v1619, 7
  %v1621 = vsub.s32 %v1618, %v1620
  %v1622 = vrot.slane %v1615, %v1621
  %v1623 = vcombine.high %v1622, %v1622
  %v1625 = vunpack.c.l.s4 1966171168
  %v1626 = vunpack.c.0.s8 %v1625
  %v1627 = vlaneseq
  %v1628 = vshrl.u32 %v1627, 7
  %v1629 = vsub.s32 %v1626, %v1628
  %v1630 = vrot.slane %v79, %v1629
  %v1631 = vcombine.high %v1630, %v1630
  %v1633 = vunpack.c.l.s4 1966171168
  %v1634 = vunpack.c.0.s8 %v1633
  %v1635 = vlaneseq
  %v1636 = vshrl.u32 %v1635, 7
  %v1637 = vsub.s32 %v1634, %v1636
  %v1638 = vrot.slane %v1631, %v1637
  %v1639 = vcombine.high %v1638, %v1638
  %v1641 = vunpack.c.l.s4 1966171168
  %v1642 = vunpack.c.0.s8 %v1641
  %v1643 = vlaneseq
  %v1644 = vshrl.u32 %v1643, 7
  %v1645 = vsub.s32 %v1642, %v1644
  %v1646 = vrot.slane %v85, %v1645
  %v1647 = vcombine.high %v1646, %v1646
  %v1649 = vunpack.c.l.s4 1966171168
  %v1650 = vunpack.c.0.s8 %v1649
  %v1651 = vlaneseq
  %v1652 = vshrl.u32 %v1651, 7
  %v1653 = vsub.s32 %v1650, %v1652
  %v1654 = vrot.slane %v1647, %v1653
  %v1655 = vcombine.high %v1654, %v1654
  %vm1664 = vcmask 253952
  %1665 = vst.msk [vmem:[#allocation2] sm:$0x1] %vm1664, %v1543
  %1666 = vst.msk [vmem:[#allocation2 + $0x1] sm:$0x1] %vm1664, %v1559
  %1667 = vst.msk [vmem:[#allocation2 + $0x2] sm:$0x1] %vm1664, %v1575
  %1668 = vst.msk [vmem:[#allocation2 + $0x3] sm:$0x1] %vm1664, %v1591
  %1669 = vst.msk [vmem:[#allocation2 + $0x4] sm:$0x1] %vm1664, %v1607
  %1670 = vst.msk [vmem:[#allocation2 + $0x5] sm:$0x1] %vm1664, %v1623
  %1671 = vst.msk [vmem:[#allocation2 + $0x6] sm:$0x1] %vm1664, %v1639
  %1672 = vst.msk [vmem:[#allocation2 + $0x7] sm:$0x1] %vm1664, %v1655
  // Predicated region
  $region26: #{tpu_custom_call.1} parent=0 // pred_check
    %p1673 = pneg %p23
  $region27: #{tpu_custom_call.1} parent=0 // pred_check_branch
    %1675 = sbr.rel (%p1673) target = $region29
  $region28: #{tpu_custom_call.1} parent=0 // pred_region
    %s1676 = smul.u32 0, 48
    %s1677 = ssub.s32 %s1676, 2
    %v1678 = vlaneseq
    %v1679 = vshrl.u32 %v1678, 7
    %v1680 = vadd.s32 %v1679, 8
    %v1681 = vadd.s32 %v1679, 16
    %v1682 = vadd.s32 %v1679, 24
    %v1683 = vadd.s32 %v1679, 32
    %v1684 = vadd.s32 %v1679, 40
    %v1685 = vstv %s1677
    %v1686 = vadd.s32 %v1685, %v1679
    %v1687 = vadd.s32 %v1685, %v1680
    %v1688 = vadd.s32 %v1685, %v1681
    %v1689 = vadd.s32 %v1685, %v1682
    %v1690 = vadd.s32 %v1685, %v1683
    %v1691 = vadd.s32 %v1685, %v1684
    %vm1692 = vcmp.ge.s32.totalorder %v1686, 0
    %vm1693 = vcmp.ge.s32.totalorder %v1687, 0
    %vm1694 = vcmp.ge.s32.totalorder %v1688, 0
    %vm1695 = vcmp.ge.s32.totalorder %v1689, 0
    %vm1696 = vcmp.ge.s32.totalorder %v1690, 0
    %vm1697 = vcmp.ge.s32.totalorder %v1691, 0
    %vm1698 = vcmp.lt.s32.totalorder %v1686, 46
    %vm1699 = vcmp.lt.s32.totalorder %v1687, 46
    %vm1700 = vcmp.lt.s32.totalorder %v1688, 46
    %vm1701 = vcmp.lt.s32.totalorder %v1689, 46
    %vm1702 = vcmp.lt.s32.totalorder %v1690, 46
    %vm1703 = vcmp.lt.s32.totalorder %v1691, 46
    %vm1704 = vmand %vm1692, %vm1698
    %vm1705 = vmand %vm1693, %vm1699
    %vm1706 = vmand %vm1694, %vm1700
    %vm1707 = vmand %vm1695, %vm1701
    %vm1708 = vmand %vm1696, %vm1702
    %vm1709 = vmand %vm1697, %vm1703
    %v1710 = vsel %vm1704, 1, 0
    %v1711 = vsel %vm1705, 1, 0
    %v1712 = vsel %vm1706, 1, 0
    %v1713 = vsel %vm1707, 1, 0
    %v1714 = vsel %vm1708, 1, 0
    %v1715 = vsel %vm1709, 1, 0
    %vm1716 = vcmp.eq.s32.totalorder %v1710, 1
    %vm1717 = vcmp.eq.s32.totalorder %v1711, 1
    %vm1718 = vcmp.eq.s32.totalorder %v1712, 1
    %vm1719 = vcmp.eq.s32.totalorder %v1713, 1
    %vm1720 = vcmp.eq.s32.totalorder %v1714, 1
    %vm1721 = vcmp.eq.s32.totalorder %v1715, 1
    %v1722 = vsel %vm1716, %v1480, -inf
    %v1723 = vsel %vm1717, %v1481, -inf
    %v1724 = vsel %vm1718, %v1482, -inf
    %v1725 = vsel %vm1719, %v1483, -inf
    %v1726 = vsel %vm1720, %v1484, -inf
    %v1727 = vsel %vm1721, %v1485, -inf
    %v1728 = vsel %vm1716, %v1486, -inf
    %v1729 = vsel %vm1717, %v1487, -inf
    %v1730 = vsel %vm1718, %v1488, -inf
    %v1731 = vsel %vm1719, %v1489, -inf
    %v1732 = vsel %vm1720, %v1490, -inf
    %v1733 = vsel %vm1721, %v1491, -inf
    %v1734 = vsel %vm1716, %v1492, -inf
    %v1735 = vsel %vm1717, %v1493, -inf
    %v1736 = vsel %vm1718, %v1494, -inf
    %v1737 = vsel %vm1719, %v1495, -inf
    %v1738 = vsel %vm1720, %v1496, -inf
    %v1739 = vsel %vm1721, %v1497, -inf
    %v1740 = vsel %vm1716, %v1498, -inf
    %v1741 = vsel %vm1717, %v1499, -inf
    %v1742 = vsel %vm1718, %v1500, -inf
    %v1743 = vsel %vm1719, %v1501, -inf
    %v1744 = vsel %vm1720, %v1502, -inf
    %v1745 = vsel %vm1721, %v1503, -inf
    %v1746 = vsel %vm1716, %v1504, -inf
    %v1747 = vsel %vm1717, %v1505, -inf
    %v1748 = vsel %vm1718, %v1506, -inf
    %v1749 = vsel %vm1719, %v1507, -inf
    %v1750 = vsel %vm1720, %v1508, -inf
    %v1751 = vsel %vm1721, %v1509, -inf
    %v1752 = vsel %vm1716, %v1510, -inf
    %v1753 = vsel %vm1717, %v1511, -inf
    %v1754 = vsel %vm1718, %v1512, -inf
    %v1755 = vsel %vm1719, %v1513, -inf
    %v1756 = vsel %vm1720, %v1514, -inf
    %v1757 = vsel %vm1721, %v1515, -inf
    %v1758 = vsel %vm1716, %v1516, -inf
    %v1759 = vsel %vm1717, %v1517, -inf
    %v1760 = vsel %vm1718, %v1518, -inf
    %v1761 = vsel %vm1719, %v1519, -inf
    %v1762 = vsel %vm1720, %v1520, -inf
    %v1763 = vsel %vm1721, %v1521, -inf
    %v1764 = vsel %vm1716, %v1522, -inf
    %v1765 = vsel %vm1717, %v1523, -inf
    %v1766 = vsel %vm1718, %v1524, -inf
    %v1767 = vsel %vm1719, %v1525, -inf
    %v1768 = vsel %vm1720, %v1526, -inf
    %v1769 = vsel %vm1721, %v1527, -inf
    %v1770 = vld [vmem:[#allocation3] sm:$0xff]
    %v1771 = vsel %vm518, %v1722, -inf
    %v1772 = vsel %vm518, %v1723, -inf
    %v1773 = vmax.f32 %v1771, %v1772
    %v1774 = vsel %vm518, %v1724, -inf
    %v1775 = vmax.f32 %v1773, %v1774
    %v1776 = vsel %vm518, %v1725, -inf
    %v1777 = vmax.f32 %v1775, %v1776
    %v1778 = vsel %vm518, %v1726, -inf
    %v1779 = vmax.f32 %v1777, %v1778
    %v1780 = vsel %vm518, %v1727, -inf
    %v1781 = vmax.f32 %v1779, %v1780
    %v1782 = vrot.slane %v1781, 4
    %v1783 = vmax.f32 %v1781, %v1782
    %v1784 = vrot.slane %v1783, 2
    %v1785 = vmax.f32 %v1783, %v1784
    %v1786 = vrot.slane %v1785, 1
    %v1787 = vmax.f32 %v1785, %v1786
    %v1788 = vsel %vm518, %v1728, -inf
    %v1789 = vsel %vm518, %v1729, -inf
    %v1790 = vmax.f32 %v1788, %v1789
    %v1791 = vsel %vm518, %v1730, -inf
    %v1792 = vmax.f32 %v1790, %v1791
    %v1793 = vsel %vm518, %v1731, -inf
    %v1794 = vmax.f32 %v1792, %v1793
    %v1795 = vsel %vm518, %v1732, -inf
    %v1796 = vmax.f32 %v1794, %v1795
    %v1797 = vsel %vm518, %v1733, -inf
    %v1798 = vmax.f32 %v1796, %v1797
    %v1799 = vrot.slane %v1798, 4
    %v1800 = vmax.f32 %v1798, %v1799
    %v1801 = vrot.slane %v1800, 2
    %v1802 = vmax.f32 %v1800, %v1801
    %v1803 = vrot.slane %v1802, 1
    %v1804 = vmax.f32 %v1802, %v1803
    %v1805 = vsel %vm518, %v1734, -inf
    %v1806 = vsel %vm518, %v1735, -inf
    %v1807 = vmax.f32 %v1805, %v1806
    %v1808 = vsel %vm518, %v1736, -inf
    %v1809 = vmax.f32 %v1807, %v1808
    %v1810 = vsel %vm518, %v1737, -inf
    %v1811 = vmax.f32 %v1809, %v1810
    %v1812 = vsel %vm518, %v1738, -inf
    %v1813 = vmax.f32 %v1811, %v1812
    %v1814 = vsel %vm518, %v1739, -inf
    %v1815 = vmax.f32 %v1813, %v1814
    %v1816 = vrot.slane %v1815, 4
    %v1817 = vmax.f32 %v1815, %v1816
    %v1818 = vrot.slane %v1817, 2
    %v1819 = vmax.f32 %v1817, %v1818
    %v1820 = vrot.slane %v1819, 1
    %v1821 = vmax.f32 %v1819, %v1820
    %v1822 = vsel %vm518, %v1740, -inf
    %v1823 = vsel %vm518, %v1741, -inf
    %v1824 = vmax.f32 %v1822, %v1823
    %v1825 = vsel %vm518, %v1742, -inf
    %v1826 = vmax.f32 %v1824, %v1825
    %v1827 = vsel %vm518, %v1743, -inf
    %v1828 = vmax.f32 %v1826, %v1827
    %v1829 = vsel %vm518, %v1744, -inf
    %v1830 = vmax.f32 %v1828, %v1829
    %v1831 = vsel %vm518, %v1745, -inf
    %v1832 = vmax.f32 %v1830, %v1831
    %v1833 = vrot.slane %v1832, 4
    %v1834 = vmax.f32 %v1832, %v1833
    %v1835 = vrot.slane %v1834, 2
    %v1836 = vmax.f32 %v1834, %v1835
    %v1837 = vrot.slane %v1836, 1
    %v1838 = vmax.f32 %v1836, %v1837
    %v1839 = vsel %vm518, %v1746, -inf
    %v1840 = vsel %vm518, %v1747, -inf
    %v1841 = vmax.f32 %v1839, %v1840
    %v1842 = vsel %vm518, %v1748, -inf
    %v1843 = vmax.f32 %v1841, %v1842
    %v1844 = vsel %vm518, %v1749, -inf
    %v1845 = vmax.f32 %v1843, %v1844
    %v1846 = vsel %vm518, %v1750, -inf
    %v1847 = vmax.f32 %v1845, %v1846
    %v1848 = vsel %vm518, %v1751, -inf
    %v1849 = vmax.f32 %v1847, %v1848
    %v1850 = vrot.slane %v1849, 4
    %v1851 = vmax.f32 %v1849, %v1850
    %v1852 = vrot.slane %v1851, 2
    %v1853 = vmax.f32 %v1851, %v1852
    %v1854 = vrot.slane %v1853, 1
    %v1855 = vmax.f32 %v1853, %v1854
    %v1856 = vsel %vm518, %v1752, -inf
    %v1857 = vsel %vm518, %v1753, -inf
    %v1858 = vmax.f32 %v1856, %v1857
    %v1859 = vsel %vm518, %v1754, -inf
    %v1860 = vmax.f32 %v1858, %v1859
    %v1861 = vsel %vm518, %v1755, -inf
    %v1862 = vmax.f32 %v1860, %v1861
    %v1863 = vsel %vm518, %v1756, -inf
    %v1864 = vmax.f32 %v1862, %v1863
    %v1865 = vsel %vm518, %v1757, -inf
    %v1866 = vmax.f32 %v1864, %v1865
    %v1867 = vrot.slane %v1866, 4
    %v1868 = vmax.f32 %v1866, %v1867
    %v1869 = vrot.slane %v1868, 2
    %v1870 = vmax.f32 %v1868, %v1869
    %v1871 = vrot.slane %v1870, 1
    %v1872 = vmax.f32 %v1870, %v1871
    %v1873 = vsel %vm518, %v1758, -inf
    %v1874 = vsel %vm518, %v1759, -inf
    %v1875 = vmax.f32 %v1873, %v1874
    %v1876 = vsel %vm518, %v1760, -inf
    %v1877 = vmax.f32 %v1875, %v1876
    %v1878 = vsel %vm518, %v1761, -inf
    %v1879 = vmax.f32 %v1877, %v1878
    %v1880 = vsel %vm518, %v1762, -inf
    %v1881 = vmax.f32 %v1879, %v1880
    %v1882 = vsel %vm518, %v1763, -inf
    %v1883 = vmax.f32 %v1881, %v1882
    %v1884 = vrot.slane %v1883, 4
    %v1885 = vmax.f32 %v1883, %v1884
    %v1886 = vrot.slane %v1885, 2
    %v1887 = vmax.f32 %v1885, %v1886
    %v1888 = vrot.slane %v1887, 1
    %v1889 = vmax.f32 %v1887, %v1888
    %v1890 = vsel %vm518, %v1764, -inf
    %v1891 = vsel %vm518, %v1765, -inf
    %v1892 = vmax.f32 %v1890, %v1891
    %v1893 = vsel %vm518, %v1766, -inf
    %v1894 = vmax.f32 %v1892, %v1893
    %v1895 = vsel %vm518, %v1767, -inf
    %v1896 = vmax.f32 %v1894, %v1895
    %v1897 = vsel %vm518, %v1768, -inf
    %v1898 = vmax.f32 %v1896, %v1897
    %v1899 = vsel %vm518, %v1769, -inf
    %v1900 = vmax.f32 %v1898, %v1899
    %v1901 = vrot.slane %v1900, 4
    %v1902 = vmax.f32 %v1900, %v1901
    %v1903 = vrot.slane %v1902, 2
    %v1904 = vmax.f32 %v1902, %v1903
    %v1905 = vrot.slane %v1904, 1
    %v1906 = vmax.f32 %v1904, %v1905
    %vm1915 = vcmask 1041409
    %v1916 = vsel %vm1915, %v1804, %v1787
    %vm1917 = vcmask 1042434
    %v1918 = vsel %vm1917, %v1821, %v1916
    %vm1919 = vcmask 1043459
    %v1920 = vsel %vm1919, %v1838, %v1918
    %vm1921 = vcmask 1044484
    %v1922 = vsel %vm1921, %v1855, %v1920
    %vm1923 = vcmask 1045509
    %v1924 = vsel %vm1923, %v1872, %v1922
    %vm1925 = vcmask 1046534
    %v1926 = vsel %vm1925, %v1889, %v1924
    %vm1927 = vcmask 1047559
    %v1928 = vsel %vm1927, %v1906, %v1926
    %v1930 = vmax.f32 %v1770, %v1928
    %1931 = vst.msk [vmem:[#allocation3] sm:$0xff] %vm518, %v1930
  $region29: #{tpu_custom_call.1} parent=0 // pred_fallthru
    _
  %p1932 = scmp.ne.s32.totalorder 0, 0
  // Predicated region
  $region30: #{tpu_custom_call.1} parent=0 // pred_check
    %p1933 = pneg %p1932
  $region31: #{tpu_custom_call.1} parent=0 // pred_check_branch
    %1935 = sbr.rel (%p1933) target = $region33
  $region32: #{tpu_custom_call.1} parent=0 // pred_region
    %v1936 = vld [vmem:[#allocation3] sm:$0xff]
    %v1937 = vsel %vm518, %v1480, -inf
    %v1938 = vsel %vm518, %v1481, -inf
    %v1939 = vmax.f32 %v1937, %v1938
    %v1940 = vsel %vm518, %v1482, -inf
    %v1941 = vmax.f32 %v1939, %v1940
    %v1942 = vsel %vm518, %v1483, -inf
    %v1943 = vmax.f32 %v1941, %v1942
    %v1944 = vsel %vm518, %v1484, -inf
    %v1945 = vmax.f32 %v1943, %v1944
    %v1946 = vsel %vm518, %v1485, -inf
    %v1947 = vmax.f32 %v1945, %v1946
    %v1948 = vrot.slane %v1947, 4
    %v1949 = vmax.f32 %v1947, %v1948
    %v1950 = vrot.slane %v1949, 2
    %v1951 = vmax.f32 %v1949, %v1950
    %v1952 = vrot.slane %v1951, 1
    %v1953 = vmax.f32 %v1951, %v1952
    %v1954 = vsel %vm518, %v1486, -inf
    %v1955 = vsel %vm518, %v1487, -inf
    %v1956 = vmax.f32 %v1954, %v1955
    %v1957 = vsel %vm518, %v1488, -inf
    %v1958 = vmax.f32 %v1956, %v1957
    %v1959 = vsel %vm518, %v1489, -inf
    %v1960 = vmax.f32 %v1958, %v1959
    %v1961 = vsel %vm518, %v1490, -inf
    %v1962 = vmax.f32 %v1960, %v1961
    %v1963 = vsel %vm518, %v1491, -inf
    %v1964 = vmax.f32 %v1962, %v1963
    %v1965 = vrot.slane %v1964, 4
    %v1966 = vmax.f32 %v1964, %v1965
    %v1967 = vrot.slane %v1966, 2
    %v1968 = vmax.f32 %v1966, %v1967
    %v1969 = vrot.slane %v1968, 1
    %v1970 = vmax.f32 %v1968, %v1969
    %v1971 = vsel %vm518, %v1492, -inf
    %v1972 = vsel %vm518, %v1493, -inf
    %v1973 = vmax.f32 %v1971, %v1972
    %v1974 = vsel %vm518, %v1494, -inf
    %v1975 = vmax.f32 %v1973, %v1974
    %v1976 = vsel %vm518, %v1495, -inf
    %v1977 = vmax.f32 %v1975, %v1976
    %v1978 = vsel %vm518, %v1496, -inf
    %v1979 = vmax.f32 %v1977, %v1978
    %v1980 = vsel %vm518, %v1497, -inf
    %v1981 = vmax.f32 %v1979, %v1980
    %v1982 = vrot.slane %v1981, 4
    %v1983 = vmax.f32 %v1981, %v1982
    %v1984 = vrot.slane %v1983, 2
    %v1985 = vmax.f32 %v1983, %v1984
    %v1986 = vrot.slane %v1985, 1
    %v1987 = vmax.f32 %v1985, %v1986
    %v1988 = vsel %vm518, %v1498, -inf
    %v1989 = vsel %vm518, %v1499, -inf
    %v1990 = vmax.f32 %v1988, %v1989
    %v1991 = vsel %vm518, %v1500, -inf
    %v1992 = vmax.f32 %v1990, %v1991
    %v1993 = vsel %vm518, %v1501, -inf
    %v1994 = vmax.f32 %v1992, %v1993
    %v1995 = vsel %vm518, %v1502, -inf
    %v1996 = vmax.f32 %v1994, %v1995
    %v1997 = vsel %vm518, %v1503, -inf
    %v1998 = vmax.f32 %v1996, %v1997
    %v1999 = vrot.slane %v1998, 4
    %v2000 = vmax.f32 %v1998, %v1999
    %v2001 = vrot.slane %v2000, 2
    %v2002 = vmax.f32 %v2000, %v2001
    %v2003 = vrot.slane %v2002, 1
    %v2004 = vmax.f32 %v2002, %v2003
    %v2005 = vsel %vm518, %v1504, -inf
    %v2006 = vsel %vm518, %v1505, -inf
    %v2007 = vmax.f32 %v2005, %v2006
    %v2008 = vsel %vm518, %v1506, -inf
    %v2009 = vmax.f32 %v2007, %v2008
    %v2010 = vsel %vm518, %v1507, -inf
    %v2011 = vmax.f32 %v2009, %v2010
    %v2012 = vsel %vm518, %v1508, -inf
    %v2013 = vmax.f32 %v2011, %v2012
    %v2014 = vsel %vm518, %v1509, -inf
    %v2015 = vmax.f32 %v2013, %v2014
    %v2016 = vrot.slane %v2015, 4
    %v2017 = vmax.f32 %v2015, %v2016
    %v2018 = vrot.slane %v2017, 2
    %v2019 = vmax.f32 %v2017, %v2018
    %v2020 = vrot.slane %v2019, 1
    %v2021 = vmax.f32 %v2019, %v2020
    %v2022 = vsel %vm518, %v1510, -inf
    %v2023 = vsel %vm518, %v1511, -inf
    %v2024 = vmax.f32 %v2022, %v2023
    %v2025 = vsel %vm518, %v1512, -inf
    %v2026 = vmax.f32 %v2024, %v2025
    %v2027 = vsel %vm518, %v1513, -inf
    %v2028 = vmax.f32 %v2026, %v2027
    %v2029 = vsel %vm518, %v1514, -inf
    %v2030 = vmax.f32 %v2028, %v2029
    %v2031 = vsel %vm518, %v1515, -inf
    %v2032 = vmax.f32 %v2030, %v2031
    %v2033 = vrot.slane %v2032, 4
    %v2034 = vmax.f32 %v2032, %v2033
    %v2035 = vrot.slane %v2034, 2
    %v2036 = vmax.f32 %v2034, %v2035
    %v2037 = vrot.slane %v2036, 1
    %v2038 = vmax.f32 %v2036, %v2037
    %v2039 = vsel %vm518, %v1516, -inf
    %v2040 = vsel %vm518, %v1517, -inf
    %v2041 = vmax.f32 %v2039, %v2040
    %v2042 = vsel %vm518, %v1518, -inf
    %v2043 = vmax.f32 %v2041, %v2042
    %v2044 = vsel %vm518, %v1519, -inf
    %v2045 = vmax.f32 %v2043, %v2044
    %v2046 = vsel %vm518, %v1520, -inf
    %v2047 = vmax.f32 %v2045, %v2046
    %v2048 = vsel %vm518, %v1521, -inf
    %v2049 = vmax.f32 %v2047, %v2048
    %v2050 = vrot.slane %v2049, 4
    %v2051 = vmax.f32 %v2049, %v2050
    %v2052 = vrot.slane %v2051, 2
    %v2053 = vmax.f32 %v2051, %v2052
    %v2054 = vrot.slane %v2053, 1
    %v2055 = vmax.f32 %v2053, %v2054
    %v2056 = vsel %vm518, %v1522, -inf
    %v2057 = vsel %vm518, %v1523, -inf
    %v2058 = vmax.f32 %v2056, %v2057
    %v2059 = vsel %vm518, %v1524, -inf
    %v2060 = vmax.f32 %v2058, %v2059
    %v2061 = vsel %vm518, %v1525, -inf
    %v2062 = vmax.f32 %v2060, %v2061
    %v2063 = vsel %vm518, %v1526, -inf
    %v2064 = vmax.f32 %v2062, %v2063
    %v2065 = vsel %vm518, %v1527, -inf
    %v2066 = vmax.f32 %v2064, %v2065
    %v2067 = vrot.slane %v2066, 4
    %v2068 = vmax.f32 %v2066, %v2067
    %v2069 = vrot.slane %v2068, 2
    %v2070 = vmax.f32 %v2068, %v2069
    %v2071 = vrot.slane %v2070, 1
    %v2072 = vmax.f32 %v2070, %v2071
    %vm2081 = vcmask 1041409
    %v2082 = vsel %vm2081, %v1970, %v1953
    %vm2083 = vcmask 1042434
    %v2084 = vsel %vm2083, %v1987, %v2082
    %vm2085 = vcmask 1043459
    %v2086 = vsel %vm2085, %v2004, %v2084
    %vm2087 = vcmask 1044484
    %v2088 = vsel %vm2087, %v2021, %v2086
    %vm2089 = vcmask 1045509
    %v2090 = vsel %vm2089, %v2038, %v2088
    %vm2091 = vcmask 1046534
    %v2092 = vsel %vm2091, %v2055, %v2090
    %vm2093 = vcmask 1047559
    %v2094 = vsel %vm2093, %v2072, %v2092
    %v2096 = vmax.f32 %v1936, %v2094
    %2097 = vst.msk [vmem:[#allocation3] sm:$0xff] %vm518, %v2096
  $region33: #{tpu_custom_call.1} parent=0 // pred_fallthru
    _
  // Predicated region
  $region34: #{tpu_custom_call.1} parent=0 // pred_check
    %p2098 = pneg %p23
  $region35: #{tpu_custom_call.1} parent=0 // pred_check_branch
    %2100 = sbr.rel (%p2098) target = $region37
  $region36: #{tpu_custom_call.1} parent=0 // pred_region
    %v2101 = vld [vmem:[#allocation3] sm:$0xff]
    %v2102 = vld [vmem:[%s2] sm:$0x1]
    %v2104 = vlaneseq
    %v2105 = vshrl.u32 %v2104, 7
    %v2106 = vsub.s32 0, %v2105
    %v2107 = vrot.slane %v2102, %v2106
    %v2109 = vadd.f32 %v2101, %v2107
    %v2110 = vld [vmem:[%s3] sm:$0x1]
    %v2112 = vlaneseq
    %v2113 = vshrl.u32 %v2112, 7
    %v2114 = vsub.s32 0, %v2113
    %v2115 = vrot.slane %v2110, %v2114
    %v2117 = vmul.f32 %v2109, %v2115
    %v2118 = vsel %vm518, %v2117, 0.0
    %2119 = vadd.xlane.f32.xlu0 %v2118
    %v2120 = vpop.xlane.xlu0 %2119
    %v2121 = vld [vmem:[#allocation4] sm:$0x1]
    %v2123 = vlaneseq
    %v2124 = vshrl.u32 %v2123, 7
    %v2125 = vsub.s32 0, %v2124
    %v2126 = vrot.slane %v2121, %v2125
    %v2128 = vadd.f32 %v2120, %v2126
    %vm2129 = vcmask 7168
    %2130 = vst.msk [vmem:[%s5] sm:$0xff] %vm2129, %v2128
  $region37: #{tpu_custom_call.1} parent=0 // pred_fallthru
    _
  // Predicated region
  $region38: #{tpu_custom_call.1} parent=0 // pred_check
    _
  $region39: #{tpu_custom_call.1} parent=0 // pred_check_branch
    %2132 = sbr.rel (0) target = $region41
  $region40: #{tpu_custom_call.1} parent=0 // pred_region
    _
  $region41: #{tpu_custom_call.1} parent=0 // pred_fallthru
    _
  // Predicated region
  $region42: #{tpu_custom_call.1} parent=0 // pred_check
    _
  $region43: #{tpu_custom_call.1} parent=0 // pred_check_branch
    %2134 = sbr.rel (0) target = $region45
  $region44: #{tpu_custom_call.1} parent=0 // pred_region
    _
  $region45: #{tpu_custom_call.1} parent=0 // pred_fallthru
    _

</llo_original>
